<compile_context>
chip_gen: v7x
topology: tpu7x:2x2x1
jax: 0.10.0
libtpu: 0.0.40
codegen_flags: <defaults>
</compile_context>

<pallas_src>
import functools

import numpy as np
import jax
import jax.numpy as jnp
from jax.experimental import pallas as pl
from jax.experimental.pallas import tpu as pltpu

# ----------------------- configuration (mirrors params of __init__) -----------------------
WIN_SIZE = 64
HOP_RATE = 0.5
HOP = int(WIN_SIZE * HOP_RATE)
FS = 16000.0
SPEED_OF_SOUND = 343.0
RES_THE = 8            # params['srp']['res_the']
RES_PHI = 64           # params['srp']['res_phi']
NUM_MICS = 4

NFREQ = WIN_SIZE // 2 + 1
NUM_PAIRS = NUM_MICS * (NUM_MICS - 1) // 2
K_DIM = NUM_PAIRS * NFREQ                  # 198 (pairs * rfft bins)
D_DIM = RES_THE * RES_PHI                  # 512 (lane aligned)
K_COL_PAD = ((K_DIM + 127) // 128) * 128   # 256  (real / imag half, lane aligned)
K_PAD = 2 * K_COL_PAD                      # 512  fused contraction dim [Gr | Gi]

assert RES_PHI & (RES_PHI - 1) == 0, "RES_PHI must be a power of two"
LOG2_RES_PHI = int(np.log2(RES_PHI))

# deterministic microphone array (stand-in for ARRAY_SETUPS[array_train]['mic_pos']), meters
MIC_POS = np.array(
    [[0.05, 0.00, 0.00],
     [-0.05, 0.00, 0.00],
     [0.00, 0.05, 0.00],
     [0.00, -0.05, 0.00]],
    dtype=np.float32,
)
_pairs = [(p, q) for p in range(NUM_MICS) for q in range(p + 1, NUM_MICS)]
PAIR_P = np.array([p for p, _ in _pairs], dtype=np.int32)
PAIR_Q = np.array([q for _, q in _pairs], dtype=np.int32)


def _round_up(x, m):
    return ((x + m - 1) // m) * m


# ---------------------- steering matrix: precomputed ONCE at module load -------------------
def _build_fused_steering_matrix():
    """(K_PAD, D) bf16 = [Wr*s ; 0 ; -Wi*s ; 0], s = 1/K_DIM folded normalization.

    Row layout matches the kernel's fused G = [Gr (256 cols) | Gi (256 cols)], so
    G @ W = Gr@Wr*s - Gi@Wi*s = Re{G W}/K (PHAT-normalized SRP map).
    """
    diff = MIC_POS[PAIR_P] - MIC_POS[PAIR_Q]                               # (P, 3)
    theta = np.linspace(0.0, np.pi, RES_THE)                               # thetaMax = pi
    phi = np.linspace(0.0, 2.0 * np.pi, RES_PHI, endpoint=False)
    th, ph = np.meshgrid(theta, phi, indexing="ij")                        # (THE, PHI)
    u = np.stack([np.sin(th) * np.cos(ph),
                  np.sin(th) * np.sin(ph),
                  np.cos(th)], axis=-1).reshape(-1, 3)                     # (D, 3), d = the*PHI + phi
    tau = (diff @ u.T) / SPEED_OF_SOUND                                    # (P, D)
    freqs = np.arange(NFREQ, dtype=np.float64) * (FS / WIN_SIZE)           # rfft bin freqs
    phase = 2.0 * np.pi * freqs[None, :, None] * tau[:, None, :]           # (P, NFREQ, D)
    scale = 1.0 / float(K_DIM)                                             # fold 1/K normalization
    wr = (np.cos(phase) * scale).reshape(K_DIM, D_DIM)
    wi = (np.sin(phase) * scale).reshape(K_DIM, D_DIM)
    w = np.zeros((K_PAD, D_DIM), dtype=np.float32)
    w[0:K_DIM] = wr
    w[K_COL_PAD:K_COL_PAD + K_DIM] = -wi                                   # sign folded into W
    return jnp.asarray(w, dtype=jnp.bfloat16)


W_FUSED = _build_fused_steering_matrix()                                   # (512, 512) bf16 constant


# ------------------------------------ Pallas kernel ---------------------------------------
def _srp_feature_kernel(cr_ref, ci_ref, w_ref, out_ref, *, inv_frames):
    """One batch tile per grid step.

    cr_ref  : (BT, F_pad, 256) f32   cross-spectrum real  (cols >= K_DIM zero-padded)
    ci_ref  : (BT, F_pad, 256) f32   cross-spectrum imag
    w_ref   : (512, 512)       bf16  fused steering matrix [Wr/K ; -Wi/K] (VMEM-resident)
    out_ref : (BT, 3*512)      f32   lanes [0:512)=srp map, [512:1024)=theta, [1024:1536)=phi
    """
    cr = cr_ref[...]
    ci = ci_ref[...]

    # PHAT per-bin normalization (rsqrt -> EUP slot); zero-padded bins stay exactly 0.
    inv_mag = jax.lax.rsqrt(cr * cr + ci * ci + 1e-24)
    # frame mean (sum over the sublane/frame axis, zero-padded frames contribute 0)
    gr = jnp.sum(cr * inv_mag, axis=1) * inv_frames                        # (BT, 256)
    gi = jnp.sum(ci * inv_mag, axis=1) * inv_frames                        # (BT, 256)

    # fused [Gr | Gi] and ONE bf16 MXU matmul with f32 accumulation.
    g = jnp.concatenate([gr, gi], axis=1).astype(jnp.bfloat16)             # (BT, 512)
    maps = jnp.dot(g, w_ref[...], preferred_element_type=jnp.float32)      # (BT, 512) f32

    # flat argmax over the (res_the, res_phi) map, first occurrence among ties.
    iota = jax.lax.broadcasted_iota(jnp.int32, maps.shape, 1)              # (BT, 512)
    max_val = jnp.max(maps, axis=1, keepdims=True)                         # (BT, 1)
    idx = jnp.min(jnp.where(maps == max_val, iota, jnp.int32(D_DIM)),
                  axis=1, keepdims=True)                                   # (BT, 1) int32

    # theta index = idx // RES_PHI, phi index = idx % RES_PHI (power-of-two shift/mask).
    the_idx = jnp.right_shift(idx, LOG2_RES_PHI)
    phi_idx = jnp.bitwise_and(idx, RES_PHI - 1)
    max_the = the_idx.astype(jnp.float32) * (1.0 / float(RES_THE))         # (BT, 1)
    max_phi = phi_idx.astype(jnp.float32) * (1.0 / float(RES_PHI))         # (BT, 1)

    # three lane-aligned direct stores (no concatenate temporary); whole row block is
    # 1536 = 12*128 lanes -> unmasked vst, and the wrapper reshape is a pure view.
    out_ref[:, 0:D_DIM] = maps
    out_ref[:, D_DIM:2 * D_DIM] = jnp.broadcast_to(max_the, maps.shape)
    out_ref[:, 2 * D_DIM:3 * D_DIM] = jnp.broadcast_to(max_phi, maps.shape)


def _run_srp_kernel(cr, ci, w, num_frames):
    b_pad, f_pad, kc = cr.shape
    k_pad, d = w.shape
    b_tile = min(b_pad, 256)                     # >=256 rows/step once batch grows (MXU fill)
    assert b_pad % b_tile == 0
    kern = functools.partial(_srp_feature_kernel, inv_frames=1.0 / float(num_frames))
    return pl.pallas_call(
        kern,
        out_shape=jax.ShapeDtypeStruct((b_pad, 3 * d), jnp.float32),
        grid=(b_pad // b_tile,),
        in_specs=[
            pl.BlockSpec((b_tile, f_pad, kc), lambda i: (i, 0, 0)),
            pl.BlockSpec((b_tile, f_pad, kc), lambda i: (i, 0, 0)),
            pl.BlockSpec((k_pad, d), lambda i: (0, 0)),        # W DMA'd once, stays resident
        ],
        out_specs=pl.BlockSpec((b_tile, 3 * d), lambda i: (i, 0)),
        compiler_params=pltpu.CompilerParams(dimension_semantics=("parallel",)),
    )(cr, ci, w)


# ----------------------------------- plain-JAX glue ---------------------------------------
def _cross_spectra(x):
    """x: (B, M, N) f32 -> padded cross-spectra (B_pad, F_pad, 256) f32 real/imag, num_frames.

    Only framing + window + rfft + pair cross-multiply stay in JAX (no FFT in Pallas);
    PHAT / frame-mean / fusion / matmul / argmax run inside the kernel.
    """
    b, m, n = x.shape
    f = (n - WIN_SIZE) // HOP + 1
    idx = (np.arange(f) * HOP)[:, None] + np.arange(WIN_SIZE)[None, :]      # static (F, WIN)
    # periodic Hann (torch.hann_window / torch.stft default)
    win = (0.5 - 0.5 * np.cos(2.0 * np.pi * np.arange(WIN_SIZE) / WIN_SIZE)).astype(np.float32)
    frames = x[:, :, idx] * jnp.asarray(win)                                # (B, M, F, WIN)
    spec = jnp.fft.rfft(frames.astype(jnp.float32), axis=-1)                # (B, M, F, NFREQ)
    cross = spec[:, PAIR_P] * jnp.conj(spec[:, PAIR_Q])                     # (B, P, F, NFREQ)
    cr = jnp.transpose(jnp.real(cross), (0, 2, 1, 3)).reshape(b, f, K_DIM)  # (B, F, K) pair-major cols
    ci = jnp.transpose(jnp.imag(cross), (0, 2, 1, 3)).reshape(b, f, K_DIM)

    b_pad = _round_up(b, 16)                                                # bf16 sublane packing
    if b_pad > 256:
        b_pad = _round_up(b_pad, 256)                                       # keep batch tiles even
    f_pad = _round_up(f, 8)
    crp = jnp.zeros((b_pad, f_pad, K_COL_PAD), jnp.float32).at[:b, :f, :K_DIM].set(cr)
    cip = jnp.zeros((b_pad, f_pad, K_COL_PAD), jnp.float32).at[:b, :f, :K_DIM].set(ci)
    return crp, cip, f


@jax.jit
def locformer_feature_extractor(x):
    """x: (batch, num_channels, num_samples) -> {'signal': (batch, 3, res_the, res_phi)}."""
    b = x.shape[0]
    cr, ci, f = _cross_spectra(x)
    out = _run_srp_kernel(cr, ci, W_FUSED, f)                               # (B_pad, 3*D) f32
    # lane-concatenated channels -> pure-view reshape, no transpose.
    maps = out[:b].reshape(b, 3, RES_THE, RES_PHI)
    return {"signal": maps}


# -------------------------------------- main -----------------------------------------------
if __name__ == "__main__":
    key = jax.random.PRNGKey(0)
    batch, num_channels, num_samples = 2, NUM_MICS, 256
    x = jax.random.normal(key, (batch, num_channels, num_samples), dtype=jnp.float32)

    out = locformer_feature_extractor(x)
    sig = jax.block_until_ready(out["signal"])
    assert sig.shape == (batch, 3, RES_THE, RES_PHI)
    assert sig.dtype == jnp.float32
    print("KERNEL_OK")
</pallas_src>

<mosaic_0001>
module attributes {stable_mosaic.version = 11 : i64} {
  func.func @_srp_feature_kernel(%arg0: i32, %arg1: memref<16x8x256xf32, #tpu.memory_space<vmem>>, %arg2: memref<16x8x256xf32, #tpu.memory_space<vmem>>, %arg3: memref<512x512xbf16, #tpu.memory_space<vmem>>, %arg4: memref<16x1536xf32, #tpu.memory_space<vmem>>) attributes {dimension_semantics = [#tpu.dimension_semantics<parallel>], iteration_bounds = array<i64: 1>, scalar_prefetch = 0 : i64, scratch_operands = 0 : i64, tpu.core_type = #tpu.core_type<tc>, window_params = [{transform_indices = @transform_0, window_bounds = array<i64: 16, 8, 256>}, {transform_indices = @transform_1, window_bounds = array<i64: 16, 8, 256>}, {pipeline_mode = #tpu.pipeline_mode<synchronous>, transform_indices = @transform_2, window_bounds = array<i64: 512, 512>}, {transform_indices = @transform_3, window_bounds = array<i64: 16, 1536>}]} {
    %c0 = arith.constant 0 : index
    %c0_0 = arith.constant 0 : index
    %c0_1 = arith.constant 0 : index
    %0 = vector.load %arg1[%c0, %c0_0, %c0_1] : memref<16x8x256xf32, #tpu.memory_space<vmem>>, vector<16x8x256xf32>
    %c0_2 = arith.constant 0 : index
    %c0_3 = arith.constant 0 : index
    %c0_4 = arith.constant 0 : index
    %1 = vector.load %arg2[%c0_2, %c0_3, %c0_4] : memref<16x8x256xf32, #tpu.memory_space<vmem>>, vector<16x8x256xf32>
    %2 = arith.mulf %0, %0 : vector<16x8x256xf32>
    %3 = arith.mulf %1, %1 : vector<16x8x256xf32>
    %4 = arith.addf %2, %3 : vector<16x8x256xf32>
    %cst = arith.constant 1.000000e-24 : f32
    %5 = vector.broadcast %cst : f32 to vector<16x8x256xf32>
    %6 = arith.addf %4, %5 : vector<16x8x256xf32>
    %7 = math.rsqrt %6 : vector<16x8x256xf32>
    %8 = arith.mulf %0, %7 : vector<16x8x256xf32>
    %cst_5 = arith.constant dense<0.000000e+00> : vector<16x256xf32>
    %9 = vector.multi_reduction <add>, %8, %cst_5 [1] : vector<16x8x256xf32> to vector<16x256xf32>
    %cst_6 = arith.constant 0.142857149 : f32
    %10 = vector.broadcast %cst_6 : f32 to vector<16x256xf32>
    %11 = arith.mulf %9, %10 : vector<16x256xf32>
    %12 = arith.mulf %1, %7 : vector<16x8x256xf32>
    %cst_7 = arith.constant dense<0.000000e+00> : vector<16x256xf32>
    %13 = vector.multi_reduction <add>, %12, %cst_7 [1] : vector<16x8x256xf32> to vector<16x256xf32>
    %cst_8 = arith.constant 0.142857149 : f32
    %14 = vector.broadcast %cst_8 : f32 to vector<16x256xf32>
    %15 = arith.mulf %13, %14 : vector<16x256xf32>
    %16 = tpu.concatenate %11, %15 in 1 : vector<16x256xf32>, vector<16x256xf32> -> vector<16x512xf32>
    %17 = arith.truncf %16 : vector<16x512xf32> to vector<16x512xbf16>
    %c0_9 = arith.constant 0 : index
    %c0_10 = arith.constant 0 : index
    %18 = vector.load %arg3[%c0_9, %c0_10] : memref<512x512xbf16, #tpu.memory_space<vmem>>, vector<512x512xbf16>
    %cst_11 = arith.constant dense<0.000000e+00> : vector<16x512xf32>
    %19 = tpu.matmul %17, %18, %cst_11 {dimension_numbers = #tpu.dot_dimension_numbers<[1], [0], [0], [1], [0, 0, 1, 1], [], []>} : vector<16x512xbf16>, vector<512x512xbf16>, vector<16x512xf32> -> vector<16x512xf32>
    %20 = tpu.iota {dimensions = array<i32: 1>} : vector<16x512xi32>
    %cst_12 = arith.constant dense<0xFF800000> : vector<16xf32>
    %21 = vector.multi_reduction <maximumf>, %19, %cst_12 [1] : vector<16x512xf32> to vector<16xf32>
    %22 = vector.shape_cast %21 : vector<16xf32> to vector<16x1xf32>
    %23 = vector.broadcast %22 : vector<16x1xf32> to vector<16x512xf32>
    %24 = arith.cmpf oeq, %19, %23 : vector<16x512xf32>
    %c512_i32 = arith.constant 512 : i32
    %25 = vector.broadcast %c512_i32 : i32 to vector<16x512xi32>
    %26 = arith.select %24, %20, %25 : vector<16x512xi1>, vector<16x512xi32>
    %cst_13 = arith.constant dense<2147483647> : vector<16xi32>
    %27 = vector.multi_reduction <minsi>, %26, %cst_13 [1] : vector<16x512xi32> to vector<16xi32>
    %28 = vector.shape_cast %27 : vector<16xi32> to vector<16x1xi32>
    %c6_i32 = arith.constant 6 : i32
    %29 = vector.broadcast %c6_i32 : i32 to vector<16x1xi32>
    %30 = arith.shrsi %28, %29 : vector<16x1xi32>
    %c63_i32 = arith.constant 63 : i32
    %31 = vector.broadcast %c63_i32 : i32 to vector<16x1xi32>
    %32 = arith.andi %28, %31 : vector<16x1xi32>
    %33 = arith.sitofp %30 : vector<16x1xi32> to vector<16x1xf32>
    %cst_14 = arith.constant 1.250000e-01 : f32
    %34 = vector.broadcast %cst_14 : f32 to vector<16x1xf32>
    %35 = arith.mulf %33, %34 : vector<16x1xf32>
    %36 = arith.sitofp %32 : vector<16x1xi32> to vector<16x1xf32>
    %cst_15 = arith.constant 1.562500e-02 : f32
    %37 = vector.broadcast %cst_15 : f32 to vector<16x1xf32>
    %38 = arith.mulf %36, %37 : vector<16x1xf32>
    %c0_16 = arith.constant 0 : index
    %c0_17 = arith.constant 0 : index
    %39 = vector.load %arg4[%c0_16, %c0_17] : memref<16x1536xf32, #tpu.memory_space<vmem>>, vector<16x512xf32>
    tpu.vector_store %arg4[%c0_16, %c0_17], %19 {strides = array<i32>} : memref<16x1536xf32, #tpu.memory_space<vmem>>, vector<16x512xf32>,
    %40 = vector.shape_cast %35 : vector<16x1xf32> to vector<16x1xf32>
    %41 = vector.broadcast %40 : vector<16x1xf32> to vector<16x512xf32>
    %c0_18 = arith.constant 0 : index
    %c512 = arith.constant 512 : index
    %42 = vector.load %arg4[%c0_18, %c512] : memref<16x1536xf32, #tpu.memory_space<vmem>>, vector<16x512xf32>
    tpu.vector_store %arg4[%c0_18, %c512], %41 {strides = array<i32>} : memref<16x1536xf32, #tpu.memory_space<vmem>>, vector<16x512xf32>,
    %43 = vector.shape_cast %38 : vector<16x1xf32> to vector<16x1xf32>
    %44 = vector.broadcast %43 : vector<16x1xf32> to vector<16x512xf32>
    %c0_19 = arith.constant 0 : index
    %c1024 = arith.constant 1024 : index
    %45 = vector.load %arg4[%c0_19, %c1024] : memref<16x1536xf32, #tpu.memory_space<vmem>>, vector<16x512xf32>
    tpu.vector_store %arg4[%c0_19, %c1024], %44 {strides = array<i32>} : memref<16x1536xf32, #tpu.memory_space<vmem>>, vector<16x512xf32>,
    return
  }
  func.func @transform_0(%arg0: i32) -> (i32, i32, i32) {
    %c0_i32 = arith.constant 0 : i32
    %c0_i32_0 = arith.constant 0 : i32
    %c0_i32_1 = arith.constant 0 : i32
    return %arg0, %c0_i32, %c0_i32_0 : i32, i32, i32
  }
  func.func @transform_1(%arg0: i32) -> (i32, i32, i32) {
    %c0_i32 = arith.constant 0 : i32
    %c0_i32_0 = arith.constant 0 : i32
    %c0_i32_1 = arith.constant 0 : i32
    return %arg0, %c0_i32, %c0_i32_0 : i32, i32, i32
  }
  func.func @transform_2(%arg0: i32) -> (i32, i32) {
    %c0_i32 = arith.constant 0 : i32
    %c0_i32_0 = arith.constant 0 : i32
    %c0_i32_1 = arith.constant 0 : i32
    return %c0_i32, %c0_i32_0 : i32, i32
  }
  func.func @transform_3(%arg0: i32) -> (i32, i32) {
    %c0_i32 = arith.constant 0 : i32
    %c0_i32_0 = arith.constant 0 : i32
    return %arg0, %c0_i32 : i32, i32
  }
}

</mosaic_0001>

<llo_original>
// kernel: locformer_feature_extractor.1
$region0: #{locformer_feature_extractor.1}
  #allocation0 [shape = 'u32[]', space=smem, size = 0x4, offset = 0x4, fixed_abs, tag = 'smem constant byte address 0x4 - core index']
  #allocation1 [shape = 'u32[144,128]{1,0:T(1,128)}', space=vmem, size = 0x12000, scoped, tag = 'internal scratch']
  %s0 = inlined_call_operand.vmem [shape: f32[16,8,256], index: 0, kind: input, shape index: {}]
  %s1 = inlined_call_operand.vmem [shape: f32[16,8,256], index: 1, kind: input, shape index: {}]
  %s2 = inlined_call_operand.vmem [shape: bf16[512,512], index: 2, kind: input, shape index: {}]
  %s3 = inlined_call_operand.vmem [shape: f32[16,1536], index: 3, kind: output, shape index: {}]
  %s4 = sld [smem:[#allocation0]]
  $region22: #{locformer_feature_extractor.1} parent=0
    _
  %s6 = ssub.s32 1, %s4
  %s7 = scalar_select 0, %s6, %s4
  // Predicated region
  $region2: #{locformer_feature_extractor.1} parent=0 // pred_check
    _
  $region3: #{locformer_feature_extractor.1} parent=0 // pred_check_branch
    %9 = sbr.rel (0) target = $region5
  $region4: #{locformer_feature_extractor.1} parent=0 // pred_region
    _
  $region5: #{locformer_feature_extractor.1} parent=0 // pred_fallthru
    _
  // Predicated region
  $region6: #{locformer_feature_extractor.1} parent=0 // pred_check
    _
  $region7: #{locformer_feature_extractor.1} parent=0 // pred_check_branch
    %11 = sbr.rel (0) target = $region9
  $region8: #{locformer_feature_extractor.1} parent=0 // pred_region
    _
  $region9: #{locformer_feature_extractor.1} parent=0 // pred_fallthru
    _
  // Predicated region
  $region10: #{locformer_feature_extractor.1} parent=0 // pred_check
    _
  $region11: #{locformer_feature_extractor.1} parent=0 // pred_check_branch
    %13 = sbr.rel (0) target = $region13
  $region12: #{locformer_feature_extractor.1} parent=0 // pred_region
    _
  $region13: #{locformer_feature_extractor.1} parent=0 // pred_fallthru
    _
  %v14 = vld [vmem:[%s0] sm:$0xff]
  %v15 = vld [vmem:[%s0 + $0x8] sm:$0xff]
  %v16 = vld [vmem:[%s0 + $0x10] sm:$0xff]
  %v17 = vld [vmem:[%s0 + $0x18] sm:$0xff]
  %v18 = vld [vmem:[%s0 + $0x20] sm:$0xff]
  %v19 = vld [vmem:[%s0 + $0x28] sm:$0xff]
  %v20 = vld [vmem:[%s0 + $0x30] sm:$0xff]
  %v21 = vld [vmem:[%s0 + $0x38] sm:$0xff]
  %v22 = vld [vmem:[%s0 + $0x40] sm:$0xff]
  %v23 = vld [vmem:[%s0 + $0x48] sm:$0xff]
  %v24 = vld [vmem:[%s0 + $0x50] sm:$0xff]
  %v25 = vld [vmem:[%s0 + $0x58] sm:$0xff]
  %v26 = vld [vmem:[%s0 + $0x60] sm:$0xff]
  %v27 = vld [vmem:[%s0 + $0x68] sm:$0xff]
  %v28 = vld [vmem:[%s0 + $0x70] sm:$0xff]
  %v29 = vld [vmem:[%s0 + $0x78] sm:$0xff]
  %v30 = vld [vmem:[%s0 + $0x80] sm:$0xff]
  %v31 = vld [vmem:[%s0 + $0x88] sm:$0xff]
  %v32 = vld [vmem:[%s0 + $0x90] sm:$0xff]
  %v33 = vld [vmem:[%s0 + $0x98] sm:$0xff]
  %v34 = vld [vmem:[%s0 + $0xa0] sm:$0xff]
  %v35 = vld [vmem:[%s0 + $0xa8] sm:$0xff]
  %v36 = vld [vmem:[%s0 + $0xb0] sm:$0xff]
  %v37 = vld [vmem:[%s0 + $0xb8] sm:$0xff]
  %v38 = vld [vmem:[%s0 + $0xc0] sm:$0xff]
  %v39 = vld [vmem:[%s0 + $0xc8] sm:$0xff]
  %v40 = vld [vmem:[%s0 + $0xd0] sm:$0xff]
  %v41 = vld [vmem:[%s0 + $0xd8] sm:$0xff]
  %v42 = vld [vmem:[%s0 + $0xe0] sm:$0xff]
  %v43 = vld [vmem:[%s0 + $0xe8] sm:$0xff]
  %v44 = vld [vmem:[%s0 + $0xf0] sm:$0xff]
  %v45 = vld [vmem:[%s0 + $0xf8] sm:$0xff]
  %v46 = vld [vmem:[%s1] sm:$0xff]
  %v47 = vld [vmem:[%s1 + $0x8] sm:$0xff]
  %v48 = vld [vmem:[%s1 + $0x10] sm:$0xff]
  %v49 = vld [vmem:[%s1 + $0x18] sm:$0xff]
  %v50 = vld [vmem:[%s1 + $0x20] sm:$0xff]
  %v51 = vld [vmem:[%s1 + $0x28] sm:$0xff]
  %v52 = vld [vmem:[%s1 + $0x30] sm:$0xff]
  %v53 = vld [vmem:[%s1 + $0x38] sm:$0xff]
  %v54 = vld [vmem:[%s1 + $0x40] sm:$0xff]
  %v55 = vld [vmem:[%s1 + $0x48] sm:$0xff]
  %v56 = vld [vmem:[%s1 + $0x50] sm:$0xff]
  %v57 = vld [vmem:[%s1 + $0x58] sm:$0xff]
  %v58 = vld [vmem:[%s1 + $0x60] sm:$0xff]
  %v59 = vld [vmem:[%s1 + $0x68] sm:$0xff]
  %v60 = vld [vmem:[%s1 + $0x70] sm:$0xff]
  %v61 = vld [vmem:[%s1 + $0x78] sm:$0xff]
  %v62 = vld [vmem:[%s1 + $0x80] sm:$0xff]
  %v63 = vld [vmem:[%s1 + $0x88] sm:$0xff]
  %v64 = vld [vmem:[%s1 + $0x90] sm:$0xff]
  %v65 = vld [vmem:[%s1 + $0x98] sm:$0xff]
  %v66 = vld [vmem:[%s1 + $0xa0] sm:$0xff]
  %v67 = vld [vmem:[%s1 + $0xa8] sm:$0xff]
  %v68 = vld [vmem:[%s1 + $0xb0] sm:$0xff]
  %v69 = vld [vmem:[%s1 + $0xb8] sm:$0xff]
  %v70 = vld [vmem:[%s1 + $0xc0] sm:$0xff]
  %v71 = vld [vmem:[%s1 + $0xc8] sm:$0xff]
  %v72 = vld [vmem:[%s1 + $0xd0] sm:$0xff]
  %v73 = vld [vmem:[%s1 + $0xd8] sm:$0xff]
  %v74 = vld [vmem:[%s1 + $0xe0] sm:$0xff]
  %v75 = vld [vmem:[%s1 + $0xe8] sm:$0xff]
  %v76 = vld [vmem:[%s1 + $0xf0] sm:$0xff]
  %v77 = vld [vmem:[%s1 + $0xf8] sm:$0xff]
  %v78 = vmul.f32 %v14, %v14
  %v79 = vmul.f32 %v15, %v15
  %v80 = vmul.f32 %v16, %v16
  %v81 = vmul.f32 %v17, %v17
  %v82 = vmul.f32 %v18, %v18
  %v83 = vmul.f32 %v19, %v19
  %v84 = vmul.f32 %v20, %v20
  %v85 = vmul.f32 %v21, %v21
  %v86 = vmul.f32 %v22, %v22
  %v87 = vmul.f32 %v23, %v23
  %v88 = vmul.f32 %v24, %v24
  %v89 = vmul.f32 %v25, %v25
  %v90 = vmul.f32 %v26, %v26
  %v91 = vmul.f32 %v27, %v27
  %v92 = vmul.f32 %v28, %v28
  %v93 = vmul.f32 %v29, %v29
  %v94 = vmul.f32 %v30, %v30
  %v95 = vmul.f32 %v31, %v31
  %v96 = vmul.f32 %v32, %v32
  %v97 = vmul.f32 %v33, %v33
  %v98 = vmul.f32 %v34, %v34
  %v99 = vmul.f32 %v35, %v35
  %v100 = vmul.f32 %v36, %v36
  %v101 = vmul.f32 %v37, %v37
  %v102 = vmul.f32 %v38, %v38
  %v103 = vmul.f32 %v39, %v39
  %v104 = vmul.f32 %v40, %v40
  %v105 = vmul.f32 %v41, %v41
  %v106 = vmul.f32 %v42, %v42
  %v107 = vmul.f32 %v43, %v43
  %v108 = vmul.f32 %v44, %v44
  %v109 = vmul.f32 %v45, %v45
  %v110 = vmul.f32 %v46, %v46
  %v111 = vmul.f32 %v47, %v47
  %v112 = vmul.f32 %v48, %v48
  %v113 = vmul.f32 %v49, %v49
  %v114 = vmul.f32 %v50, %v50
  %v115 = vmul.f32 %v51, %v51
  %v116 = vmul.f32 %v52, %v52
  %v117 = vmul.f32 %v53, %v53
  %v118 = vmul.f32 %v54, %v54
  %v119 = vmul.f32 %v55, %v55
  %v120 = vmul.f32 %v56, %v56
  %v121 = vmul.f32 %v57, %v57
  %v122 = vmul.f32 %v58, %v58
  %v123 = vmul.f32 %v59, %v59
  %v124 = vmul.f32 %v60, %v60
  %v125 = vmul.f32 %v61, %v61
  %v126 = vmul.f32 %v62, %v62
  %v127 = vmul.f32 %v63, %v63
  %v128 = vmul.f32 %v64, %v64
  %v129 = vmul.f32 %v65, %v65
  %v130 = vmul.f32 %v66, %v66
  %v131 = vmul.f32 %v67, %v67
  %v132 = vmul.f32 %v68, %v68
  %v133 = vmul.f32 %v69, %v69
  %v134 = vmul.f32 %v70, %v70
  %v135 = vmul.f32 %v71, %v71
  %v136 = vmul.f32 %v72, %v72
  %v137 = vmul.f32 %v73, %v73
  %v138 = vmul.f32 %v74, %v74
  %v139 = vmul.f32 %v75, %v75
  %v140 = vmul.f32 %v76, %v76
  %v141 = vmul.f32 %v77, %v77
  %v142 = vadd.f32 %v78, %v110
  %v143 = vadd.f32 %v79, %v111
  %v144 = vadd.f32 %v80, %v112
  %v145 = vadd.f32 %v81, %v113
  %v146 = vadd.f32 %v82, %v114
  %v147 = vadd.f32 %v83, %v115
  %v148 = vadd.f32 %v84, %v116
  %v149 = vadd.f32 %v85, %v117
  %v150 = vadd.f32 %v86, %v118
  %v151 = vadd.f32 %v87, %v119
  %v152 = vadd.f32 %v88, %v120
  %v153 = vadd.f32 %v89, %v121
  %v154 = vadd.f32 %v90, %v122
  %v155 = vadd.f32 %v91, %v123
  %v156 = vadd.f32 %v92, %v124
  %v157 = vadd.f32 %v93, %v125
  %v158 = vadd.f32 %v94, %v126
  %v159 = vadd.f32 %v95, %v127
  %v160 = vadd.f32 %v96, %v128
  %v161 = vadd.f32 %v97, %v129
  %v162 = vadd.f32 %v98, %v130
  %v163 = vadd.f32 %v99, %v131
  %v164 = vadd.f32 %v100, %v132
  %v165 = vadd.f32 %v101, %v133
  %v166 = vadd.f32 %v102, %v134
  %v167 = vadd.f32 %v103, %v135
  %v168 = vadd.f32 %v104, %v136
  %v169 = vadd.f32 %v105, %v137
  %v170 = vadd.f32 %v106, %v138
  %v171 = vadd.f32 %v107, %v139
  %v172 = vadd.f32 %v108, %v140
  %v173 = vadd.f32 %v109, %v141
  %v174 = vadd.f32 %v142, 1e-24
  %v175 = vadd.f32 %v143, 1e-24
  %v176 = vadd.f32 %v144, 1e-24
  %v177 = vadd.f32 %v145, 1e-24
  %v178 = vadd.f32 %v146, 1e-24
  %v179 = vadd.f32 %v147, 1e-24
  %v180 = vadd.f32 %v148, 1e-24
  %v181 = vadd.f32 %v149, 1e-24
  %v182 = vadd.f32 %v150, 1e-24
  %v183 = vadd.f32 %v151, 1e-24
  %v184 = vadd.f32 %v152, 1e-24
  %v185 = vadd.f32 %v153, 1e-24
  %v186 = vadd.f32 %v154, 1e-24
  %v187 = vadd.f32 %v155, 1e-24
  %v188 = vadd.f32 %v156, 1e-24
  %v189 = vadd.f32 %v157, 1e-24
  %v190 = vadd.f32 %v158, 1e-24
  %v191 = vadd.f32 %v159, 1e-24
  %v192 = vadd.f32 %v160, 1e-24
  %v193 = vadd.f32 %v161, 1e-24
  %v194 = vadd.f32 %v162, 1e-24
  %v195 = vadd.f32 %v163, 1e-24
  %v196 = vadd.f32 %v164, 1e-24
  %v197 = vadd.f32 %v165, 1e-24
  %v198 = vadd.f32 %v166, 1e-24
  %v199 = vadd.f32 %v167, 1e-24
  %v200 = vadd.f32 %v168, 1e-24
  %v201 = vadd.f32 %v169, 1e-24
  %v202 = vadd.f32 %v170, 1e-24
  %v203 = vadd.f32 %v171, 1e-24
  %v204 = vadd.f32 %v172, 1e-24
  %v205 = vadd.f32 %v173, 1e-24
  %v206 = vrsqrt.pop %v174
  %v207 = vrsqrt.pop %v175
  %v208 = vrsqrt.pop %v176
  %v209 = vrsqrt.pop %v177
  %v210 = vrsqrt.pop %v178
  %v211 = vrsqrt.pop %v179
  %v212 = vrsqrt.pop %v180
  %v213 = vrsqrt.pop %v181
  %v214 = vrsqrt.pop %v182
  %v215 = vrsqrt.pop %v183
  %v216 = vrsqrt.pop %v184
  %v217 = vrsqrt.pop %v185
  %v218 = vrsqrt.pop %v186
  %v219 = vrsqrt.pop %v187
  %v220 = vrsqrt.pop %v188
  %v221 = vrsqrt.pop %v189
  %v222 = vrsqrt.pop %v190
  %v223 = vrsqrt.pop %v191
  %v224 = vrsqrt.pop %v192
  %v225 = vrsqrt.pop %v193
  %v226 = vrsqrt.pop %v194
  %v227 = vrsqrt.pop %v195
  %v228 = vrsqrt.pop %v196
  %v229 = vrsqrt.pop %v197
  %v230 = vrsqrt.pop %v198
  %v231 = vrsqrt.pop %v199
  %v232 = vrsqrt.pop %v200
  %v233 = vrsqrt.pop %v201
  %v234 = vrsqrt.pop %v202
  %v235 = vrsqrt.pop %v203
  %v236 = vrsqrt.pop %v204
  %v237 = vrsqrt.pop %v205
  %v238 = vmul.f32 %v14, %v206
  %v239 = vmul.f32 %v15, %v207
  %v240 = vmul.f32 %v16, %v208
  %v241 = vmul.f32 %v17, %v209
  %v242 = vmul.f32 %v18, %v210
  %v243 = vmul.f32 %v19, %v211
  %v244 = vmul.f32 %v20, %v212
  %v245 = vmul.f32 %v21, %v213
  %v246 = vmul.f32 %v22, %v214
  %v247 = vmul.f32 %v23, %v215
  %v248 = vmul.f32 %v24, %v216
  %v249 = vmul.f32 %v25, %v217
  %v250 = vmul.f32 %v26, %v218
  %v251 = vmul.f32 %v27, %v219
  %v252 = vmul.f32 %v28, %v220
  %v253 = vmul.f32 %v29, %v221
  %v254 = vmul.f32 %v30, %v222
  %v255 = vmul.f32 %v31, %v223
  %v256 = vmul.f32 %v32, %v224
  %v257 = vmul.f32 %v33, %v225
  %v258 = vmul.f32 %v34, %v226
  %v259 = vmul.f32 %v35, %v227
  %v260 = vmul.f32 %v36, %v228
  %v261 = vmul.f32 %v37, %v229
  %v262 = vmul.f32 %v38, %v230
  %v263 = vmul.f32 %v39, %v231
  %v264 = vmul.f32 %v40, %v232
  %v265 = vmul.f32 %v41, %v233
  %v266 = vmul.f32 %v42, %v234
  %v267 = vmul.f32 %v43, %v235
  %v268 = vmul.f32 %v44, %v236
  %v269 = vmul.f32 %v45, %v237
  %v270 = vrot.slane %v238, 4
  %v271 = vadd.f32 %v238, %v270
  %v272 = vrot.slane %v271, 2
  %v273 = vadd.f32 %v271, %v272
  %v274 = vrot.slane %v273, 1
  %v275 = vadd.f32 %v273, %v274
  %v276 = vrot.slane %v239, 4
  %v277 = vadd.f32 %v239, %v276
  %v278 = vrot.slane %v277, 2
  %v279 = vadd.f32 %v277, %v278
  %v280 = vrot.slane %v279, 1
  %v281 = vadd.f32 %v279, %v280
  %v282 = vrot.slane %v240, 4
  %v283 = vadd.f32 %v240, %v282
  %v284 = vrot.slane %v283, 2
  %v285 = vadd.f32 %v283, %v284
  %v286 = vrot.slane %v285, 1
  %v287 = vadd.f32 %v285, %v286
  %v288 = vrot.slane %v241, 4
  %v289 = vadd.f32 %v241, %v288
  %v290 = vrot.slane %v289, 2
  %v291 = vadd.f32 %v289, %v290
  %v292 = vrot.slane %v291, 1
  %v293 = vadd.f32 %v291, %v292
  %v294 = vrot.slane %v242, 4
  %v295 = vadd.f32 %v242, %v294
  %v296 = vrot.slane %v295, 2
  %v297 = vadd.f32 %v295, %v296
  %v298 = vrot.slane %v297, 1
  %v299 = vadd.f32 %v297, %v298
  %v300 = vrot.slane %v243, 4
  %v301 = vadd.f32 %v243, %v300
  %v302 = vrot.slane %v301, 2
  %v303 = vadd.f32 %v301, %v302
  %v304 = vrot.slane %v303, 1
  %v305 = vadd.f32 %v303, %v304
  %v306 = vrot.slane %v244, 4
  %v307 = vadd.f32 %v244, %v306
  %v308 = vrot.slane %v307, 2
  %v309 = vadd.f32 %v307, %v308
  %v310 = vrot.slane %v309, 1
  %v311 = vadd.f32 %v309, %v310
  %v312 = vrot.slane %v245, 4
  %v313 = vadd.f32 %v245, %v312
  %v314 = vrot.slane %v313, 2
  %v315 = vadd.f32 %v313, %v314
  %v316 = vrot.slane %v315, 1
  %v317 = vadd.f32 %v315, %v316
  %v318 = vrot.slane %v246, 4
  %v319 = vadd.f32 %v246, %v318
  %v320 = vrot.slane %v319, 2
  %v321 = vadd.f32 %v319, %v320
  %v322 = vrot.slane %v321, 1
  %v323 = vadd.f32 %v321, %v322
  %v324 = vrot.slane %v247, 4
  %v325 = vadd.f32 %v247, %v324
  %v326 = vrot.slane %v325, 2
  %v327 = vadd.f32 %v325, %v326
  %v328 = vrot.slane %v327, 1
  %v329 = vadd.f32 %v327, %v328
  %v330 = vrot.slane %v248, 4
  %v331 = vadd.f32 %v248, %v330
  %v332 = vrot.slane %v331, 2
  %v333 = vadd.f32 %v331, %v332
  %v334 = vrot.slane %v333, 1
  %v335 = vadd.f32 %v333, %v334
  %v336 = vrot.slane %v249, 4
  %v337 = vadd.f32 %v249, %v336
  %v338 = vrot.slane %v337, 2
  %v339 = vadd.f32 %v337, %v338
  %v340 = vrot.slane %v339, 1
  %v341 = vadd.f32 %v339, %v340
  %v342 = vrot.slane %v250, 4
  %v343 = vadd.f32 %v250, %v342
  %v344 = vrot.slane %v343, 2
  %v345 = vadd.f32 %v343, %v344
  %v346 = vrot.slane %v345, 1
  %v347 = vadd.f32 %v345, %v346
  %v348 = vrot.slane %v251, 4
  %v349 = vadd.f32 %v251, %v348
  %v350 = vrot.slane %v349, 2
  %v351 = vadd.f32 %v349, %v350
  %v352 = vrot.slane %v351, 1
  %v353 = vadd.f32 %v351, %v352
  %v354 = vrot.slane %v252, 4
  %v355 = vadd.f32 %v252, %v354
  %v356 = vrot.slane %v355, 2
  %v357 = vadd.f32 %v355, %v356
  %v358 = vrot.slane %v357, 1
  %v359 = vadd.f32 %v357, %v358
  %v360 = vrot.slane %v253, 4
  %v361 = vadd.f32 %v253, %v360
  %v362 = vrot.slane %v361, 2
  %v363 = vadd.f32 %v361, %v362
  %v364 = vrot.slane %v363, 1
  %v365 = vadd.f32 %v363, %v364
  %v366 = vrot.slane %v254, 4
  %v367 = vadd.f32 %v254, %v366
  %v368 = vrot.slane %v367, 2
  %v369 = vadd.f32 %v367, %v368
  %v370 = vrot.slane %v369, 1
  %v371 = vadd.f32 %v369, %v370
  %v372 = vrot.slane %v255, 4
  %v373 = vadd.f32 %v255, %v372
  %v374 = vrot.slane %v373, 2
  %v375 = vadd.f32 %v373, %v374
  %v376 = vrot.slane %v375, 1
  %v377 = vadd.f32 %v375, %v376
  %v378 = vrot.slane %v256, 4
  %v379 = vadd.f32 %v256, %v378
  %v380 = vrot.slane %v379, 2
  %v381 = vadd.f32 %v379, %v380
  %v382 = vrot.slane %v381, 1
  %v383 = vadd.f32 %v381, %v382
  %v384 = vrot.slane %v257, 4
  %v385 = vadd.f32 %v257, %v384
  %v386 = vrot.slane %v385, 2
  %v387 = vadd.f32 %v385, %v386
  %v388 = vrot.slane %v387, 1
  %v389 = vadd.f32 %v387, %v388
  %v390 = vrot.slane %v258, 4
  %v391 = vadd.f32 %v258, %v390
  %v392 = vrot.slane %v391, 2
  %v393 = vadd.f32 %v391, %v392
  %v394 = vrot.slane %v393, 1
  %v395 = vadd.f32 %v393, %v394
  %v396 = vrot.slane %v259, 4
  %v397 = vadd.f32 %v259, %v396
  %v398 = vrot.slane %v397, 2
  %v399 = vadd.f32 %v397, %v398
  %v400 = vrot.slane %v399, 1
  %v401 = vadd.f32 %v399, %v400
  %v402 = vrot.slane %v260, 4
  %v403 = vadd.f32 %v260, %v402
  %v404 = vrot.slane %v403, 2
  %v405 = vadd.f32 %v403, %v404
  %v406 = vrot.slane %v405, 1
  %v407 = vadd.f32 %v405, %v406
  %v408 = vrot.slane %v261, 4
  %v409 = vadd.f32 %v261, %v408
  %v410 = vrot.slane %v409, 2
  %v411 = vadd.f32 %v409, %v410
  %v412 = vrot.slane %v411, 1
  %v413 = vadd.f32 %v411, %v412
  %v414 = vrot.slane %v262, 4
  %v415 = vadd.f32 %v262, %v414
  %v416 = vrot.slane %v415, 2
  %v417 = vadd.f32 %v415, %v416
  %v418 = vrot.slane %v417, 1
  %v419 = vadd.f32 %v417, %v418
  %v420 = vrot.slane %v263, 4
  %v421 = vadd.f32 %v263, %v420
  %v422 = vrot.slane %v421, 2
  %v423 = vadd.f32 %v421, %v422
  %v424 = vrot.slane %v423, 1
  %v425 = vadd.f32 %v423, %v424
  %v426 = vrot.slane %v264, 4
  %v427 = vadd.f32 %v264, %v426
  %v428 = vrot.slane %v427, 2
  %v429 = vadd.f32 %v427, %v428
  %v430 = vrot.slane %v429, 1
  %v431 = vadd.f32 %v429, %v430
  %v432 = vrot.slane %v265, 4
  %v433 = vadd.f32 %v265, %v432
  %v434 = vrot.slane %v433, 2
  %v435 = vadd.f32 %v433, %v434
  %v436 = vrot.slane %v435, 1
  %v437 = vadd.f32 %v435, %v436
  %v438 = vrot.slane %v266, 4
  %v439 = vadd.f32 %v266, %v438
  %v440 = vrot.slane %v439, 2
  %v441 = vadd.f32 %v439, %v440
  %v442 = vrot.slane %v441, 1
  %v443 = vadd.f32 %v441, %v442
  %v444 = vrot.slane %v267, 4
  %v445 = vadd.f32 %v267, %v444
  %v446 = vrot.slane %v445, 2
  %v447 = vadd.f32 %v445, %v446
  %v448 = vrot.slane %v447, 1
  %v449 = vadd.f32 %v447, %v448
  %v450 = vrot.slane %v268, 4
  %v451 = vadd.f32 %v268, %v450
  %v452 = vrot.slane %v451, 2
  %v453 = vadd.f32 %v451, %v452
  %v454 = vrot.slane %v453, 1
  %v455 = vadd.f32 %v453, %v454
  %v456 = vrot.slane %v269, 4
  %v457 = vadd.f32 %v269, %v456
  %v458 = vrot.slane %v457, 2
  %v459 = vadd.f32 %v457, %v458
  %v460 = vrot.slane %v459, 1
  %v461 = vadd.f32 %v459, %v460
  %v462 = vmul.f32 %v275, 0.14285715
  %v463 = vmul.f32 %v281, 0.14285715
  %v464 = vmul.f32 %v287, 0.14285715
  %v465 = vmul.f32 %v293, 0.14285715
  %v466 = vmul.f32 %v299, 0.14285715
  %v467 = vmul.f32 %v305, 0.14285715
  %v468 = vmul.f32 %v311, 0.14285715
  %v469 = vmul.f32 %v317, 0.14285715
  %v470 = vmul.f32 %v323, 0.14285715
  %v471 = vmul.f32 %v329, 0.14285715
  %v472 = vmul.f32 %v335, 0.14285715
  %v473 = vmul.f32 %v341, 0.14285715
  %v474 = vmul.f32 %v347, 0.14285715
  %v475 = vmul.f32 %v353, 0.14285715
  %v476 = vmul.f32 %v359, 0.14285715
  %v477 = vmul.f32 %v365, 0.14285715
  %v478 = vmul.f32 %v371, 0.14285715
  %v479 = vmul.f32 %v377, 0.14285715
  %v480 = vmul.f32 %v383, 0.14285715
  %v481 = vmul.f32 %v389, 0.14285715
  %v482 = vmul.f32 %v395, 0.14285715
  %v483 = vmul.f32 %v401, 0.14285715
  %v484 = vmul.f32 %v407, 0.14285715
  %v485 = vmul.f32 %v413, 0.14285715
  %v486 = vmul.f32 %v419, 0.14285715
  %v487 = vmul.f32 %v425, 0.14285715
  %v488 = vmul.f32 %v431, 0.14285715
  %v489 = vmul.f32 %v437, 0.14285715
  %v490 = vmul.f32 %v443, 0.14285715
  %v491 = vmul.f32 %v449, 0.14285715
  %v492 = vmul.f32 %v455, 0.14285715
  %v493 = vmul.f32 %v461, 0.14285715
  %v494 = vmul.f32 %v46, %v206
  %v495 = vmul.f32 %v47, %v207
  %v496 = vmul.f32 %v48, %v208
  %v497 = vmul.f32 %v49, %v209
  %v498 = vmul.f32 %v50, %v210
  %v499 = vmul.f32 %v51, %v211
  %v500 = vmul.f32 %v52, %v212
  %v501 = vmul.f32 %v53, %v213
  %v502 = vmul.f32 %v54, %v214
  %v503 = vmul.f32 %v55, %v215
  %v504 = vmul.f32 %v56, %v216
  %v505 = vmul.f32 %v57, %v217
  %v506 = vmul.f32 %v58, %v218
  %v507 = vmul.f32 %v59, %v219
  %v508 = vmul.f32 %v60, %v220
  %v509 = vmul.f32 %v61, %v221
  %v510 = vmul.f32 %v62, %v222
  %v511 = vmul.f32 %v63, %v223
  %v512 = vmul.f32 %v64, %v224
  %v513 = vmul.f32 %v65, %v225
  %v514 = vmul.f32 %v66, %v226
  %v515 = vmul.f32 %v67, %v227
  %v516 = vmul.f32 %v68, %v228
  %v517 = vmul.f32 %v69, %v229
  %v518 = vmul.f32 %v70, %v230
  %v519 = vmul.f32 %v71, %v231
  %v520 = vmul.f32 %v72, %v232
  %v521 = vmul.f32 %v73, %v233
  %v522 = vmul.f32 %v74, %v234
  %v523 = vmul.f32 %v75, %v235
  %v524 = vmul.f32 %v76, %v236
  %v525 = vmul.f32 %v77, %v237
  %v526 = vrot.slane %v494, 4
  %v527 = vadd.f32 %v494, %v526
  %v528 = vrot.slane %v527, 2
  %v529 = vadd.f32 %v527, %v528
  %v530 = vrot.slane %v529, 1
  %v531 = vadd.f32 %v529, %v530
  %v532 = vrot.slane %v495, 4
  %v533 = vadd.f32 %v495, %v532
  %v534 = vrot.slane %v533, 2
  %v535 = vadd.f32 %v533, %v534
  %v536 = vrot.slane %v535, 1
  %v537 = vadd.f32 %v535, %v536
  %v538 = vrot.slane %v496, 4
  %v539 = vadd.f32 %v496, %v538
  %v540 = vrot.slane %v539, 2
  %v541 = vadd.f32 %v539, %v540
  %v542 = vrot.slane %v541, 1
  %v543 = vadd.f32 %v541, %v542
  %v544 = vrot.slane %v497, 4
  %v545 = vadd.f32 %v497, %v544
  %v546 = vrot.slane %v545, 2
  %v547 = vadd.f32 %v545, %v546
  %v548 = vrot.slane %v547, 1
  %v549 = vadd.f32 %v547, %v548
  %v550 = vrot.slane %v498, 4
  %v551 = vadd.f32 %v498, %v550
  %v552 = vrot.slane %v551, 2
  %v553 = vadd.f32 %v551, %v552
  %v554 = vrot.slane %v553, 1
  %v555 = vadd.f32 %v553, %v554
  %v556 = vrot.slane %v499, 4
  %v557 = vadd.f32 %v499, %v556
  %v558 = vrot.slane %v557, 2
  %v559 = vadd.f32 %v557, %v558
  %v560 = vrot.slane %v559, 1
  %v561 = vadd.f32 %v559, %v560
  %v562 = vrot.slane %v500, 4
  %v563 = vadd.f32 %v500, %v562
  %v564 = vrot.slane %v563, 2
  %v565 = vadd.f32 %v563, %v564
  %v566 = vrot.slane %v565, 1
  %v567 = vadd.f32 %v565, %v566
  %v568 = vrot.slane %v501, 4
  %v569 = vadd.f32 %v501, %v568
  %v570 = vrot.slane %v569, 2
  %v571 = vadd.f32 %v569, %v570
  %v572 = vrot.slane %v571, 1
  %v573 = vadd.f32 %v571, %v572
  %v574 = vrot.slane %v502, 4
  %v575 = vadd.f32 %v502, %v574
  %v576 = vrot.slane %v575, 2
  %v577 = vadd.f32 %v575, %v576
  %v578 = vrot.slane %v577, 1
  %v579 = vadd.f32 %v577, %v578
  %v580 = vrot.slane %v503, 4
  %v581 = vadd.f32 %v503, %v580
  %v582 = vrot.slane %v581, 2
  %v583 = vadd.f32 %v581, %v582
  %v584 = vrot.slane %v583, 1
  %v585 = vadd.f32 %v583, %v584
  %v586 = vrot.slane %v504, 4
  %v587 = vadd.f32 %v504, %v586
  %v588 = vrot.slane %v587, 2
  %v589 = vadd.f32 %v587, %v588
  %v590 = vrot.slane %v589, 1
  %v591 = vadd.f32 %v589, %v590
  %v592 = vrot.slane %v505, 4
  %v593 = vadd.f32 %v505, %v592
  %v594 = vrot.slane %v593, 2
  %v595 = vadd.f32 %v593, %v594
  %v596 = vrot.slane %v595, 1
  %v597 = vadd.f32 %v595, %v596
  %v598 = vrot.slane %v506, 4
  %v599 = vadd.f32 %v506, %v598
  %v600 = vrot.slane %v599, 2
  %v601 = vadd.f32 %v599, %v600
  %v602 = vrot.slane %v601, 1
  %v603 = vadd.f32 %v601, %v602
  %v604 = vrot.slane %v507, 4
  %v605 = vadd.f32 %v507, %v604
  %v606 = vrot.slane %v605, 2
  %v607 = vadd.f32 %v605, %v606
  %v608 = vrot.slane %v607, 1
  %v609 = vadd.f32 %v607, %v608
  %v610 = vrot.slane %v508, 4
  %v611 = vadd.f32 %v508, %v610
  %v612 = vrot.slane %v611, 2
  %v613 = vadd.f32 %v611, %v612
  %v614 = vrot.slane %v613, 1
  %v615 = vadd.f32 %v613, %v614
  %v616 = vrot.slane %v509, 4
  %v617 = vadd.f32 %v509, %v616
  %v618 = vrot.slane %v617, 2
  %v619 = vadd.f32 %v617, %v618
  %v620 = vrot.slane %v619, 1
  %v621 = vadd.f32 %v619, %v620
  %v622 = vrot.slane %v510, 4
  %v623 = vadd.f32 %v510, %v622
  %v624 = vrot.slane %v623, 2
  %v625 = vadd.f32 %v623, %v624
  %v626 = vrot.slane %v625, 1
  %v627 = vadd.f32 %v625, %v626
  %v628 = vrot.slane %v511, 4
  %v629 = vadd.f32 %v511, %v628
  %v630 = vrot.slane %v629, 2
  %v631 = vadd.f32 %v629, %v630
  %v632 = vrot.slane %v631, 1
  %v633 = vadd.f32 %v631, %v632
  %v634 = vrot.slane %v512, 4
  %v635 = vadd.f32 %v512, %v634
  %v636 = vrot.slane %v635, 2
  %v637 = vadd.f32 %v635, %v636
  %v638 = vrot.slane %v637, 1
  %v639 = vadd.f32 %v637, %v638
  %v640 = vrot.slane %v513, 4
  %v641 = vadd.f32 %v513, %v640
  %v642 = vrot.slane %v641, 2
  %v643 = vadd.f32 %v641, %v642
  %v644 = vrot.slane %v643, 1
  %v645 = vadd.f32 %v643, %v644
  %v646 = vrot.slane %v514, 4
  %v647 = vadd.f32 %v514, %v646
  %v648 = vrot.slane %v647, 2
  %v649 = vadd.f32 %v647, %v648
  %v650 = vrot.slane %v649, 1
  %v651 = vadd.f32 %v649, %v650
  %v652 = vrot.slane %v515, 4
  %v653 = vadd.f32 %v515, %v652
  %v654 = vrot.slane %v653, 2
  %v655 = vadd.f32 %v653, %v654
  %v656 = vrot.slane %v655, 1
  %v657 = vadd.f32 %v655, %v656
  %v658 = vrot.slane %v516, 4
  %v659 = vadd.f32 %v516, %v658
  %v660 = vrot.slane %v659, 2
  %v661 = vadd.f32 %v659, %v660
  %v662 = vrot.slane %v661, 1
  %v663 = vadd.f32 %v661, %v662
  %v664 = vrot.slane %v517, 4
  %v665 = vadd.f32 %v517, %v664
  %v666 = vrot.slane %v665, 2
  %v667 = vadd.f32 %v665, %v666
  %v668 = vrot.slane %v667, 1
  %v669 = vadd.f32 %v667, %v668
  %v670 = vrot.slane %v518, 4
  %v671 = vadd.f32 %v518, %v670
  %v672 = vrot.slane %v671, 2
  %v673 = vadd.f32 %v671, %v672
  %v674 = vrot.slane %v673, 1
  %v675 = vadd.f32 %v673, %v674
  %v676 = vrot.slane %v519, 4
  %v677 = vadd.f32 %v519, %v676
  %v678 = vrot.slane %v677, 2
  %v679 = vadd.f32 %v677, %v678
  %v680 = vrot.slane %v679, 1
  %v681 = vadd.f32 %v679, %v680
  %v682 = vrot.slane %v520, 4
  %v683 = vadd.f32 %v520, %v682
  %v684 = vrot.slane %v683, 2
  %v685 = vadd.f32 %v683, %v684
  %v686 = vrot.slane %v685, 1
  %v687 = vadd.f32 %v685, %v686
  %v688 = vrot.slane %v521, 4
  %v689 = vadd.f32 %v521, %v688
  %v690 = vrot.slane %v689, 2
  %v691 = vadd.f32 %v689, %v690
  %v692 = vrot.slane %v691, 1
  %v693 = vadd.f32 %v691, %v692
  %v694 = vrot.slane %v522, 4
  %v695 = vadd.f32 %v522, %v694
  %v696 = vrot.slane %v695, 2
  %v697 = vadd.f32 %v695, %v696
  %v698 = vrot.slane %v697, 1
  %v699 = vadd.f32 %v697, %v698
  %v700 = vrot.slane %v523, 4
  %v701 = vadd.f32 %v523, %v700
  %v702 = vrot.slane %v701, 2
  %v703 = vadd.f32 %v701, %v702
  %v704 = vrot.slane %v703, 1
  %v705 = vadd.f32 %v703, %v704
  %v706 = vrot.slane %v524, 4
  %v707 = vadd.f32 %v524, %v706
  %v708 = vrot.slane %v707, 2
  %v709 = vadd.f32 %v707, %v708
  %v710 = vrot.slane %v709, 1
  %v711 = vadd.f32 %v709, %v710
  %v712 = vrot.slane %v525, 4
  %v713 = vadd.f32 %v525, %v712
  %v714 = vrot.slane %v713, 2
  %v715 = vadd.f32 %v713, %v714
  %v716 = vrot.slane %v715, 1
  %v717 = vadd.f32 %v715, %v716
  %v718 = vmul.f32 %v531, 0.14285715
  %v719 = vmul.f32 %v537, 0.14285715
  %v720 = vmul.f32 %v543, 0.14285715
  %v721 = vmul.f32 %v549, 0.14285715
  %v722 = vmul.f32 %v555, 0.14285715
  %v723 = vmul.f32 %v561, 0.14285715
  %v724 = vmul.f32 %v567, 0.14285715
  %v725 = vmul.f32 %v573, 0.14285715
  %v726 = vmul.f32 %v579, 0.14285715
  %v727 = vmul.f32 %v585, 0.14285715
  %v728 = vmul.f32 %v591, 0.14285715
  %v729 = vmul.f32 %v597, 0.14285715
  %v730 = vmul.f32 %v603, 0.14285715
  %v731 = vmul.f32 %v609, 0.14285715
  %v732 = vmul.f32 %v615, 0.14285715
  %v733 = vmul.f32 %v621, 0.14285715
  %v734 = vmul.f32 %v627, 0.14285715
  %v735 = vmul.f32 %v633, 0.14285715
  %v736 = vmul.f32 %v639, 0.14285715
  %v737 = vmul.f32 %v645, 0.14285715
  %v738 = vmul.f32 %v651, 0.14285715
  %v739 = vmul.f32 %v657, 0.14285715
  %v740 = vmul.f32 %v663, 0.14285715
  %v741 = vmul.f32 %v669, 0.14285715
  %v742 = vmul.f32 %v675, 0.14285715
  %v743 = vmul.f32 %v681, 0.14285715
  %v744 = vmul.f32 %v687, 0.14285715
  %v745 = vmul.f32 %v693, 0.14285715
  %v746 = vmul.f32 %v699, 0.14285715
  %v747 = vmul.f32 %v705, 0.14285715
  %v748 = vmul.f32 %v711, 0.14285715
  %v749 = vmul.f32 %v717, 0.14285715
  %vm782 = vcmask 1041409
  %v783 = vsel %vm782, %v464, %v462
  %vm784 = vcmask 1042434
  %v785 = vsel %vm784, %v466, %v783
  %vm786 = vcmask 1043459
  %v787 = vsel %vm786, %v468, %v785
  %vm788 = vcmask 1044484
  %v789 = vsel %vm788, %v470, %v787
  %vm790 = vcmask 1045509
  %v791 = vsel %vm790, %v472, %v789
  %vm792 = vcmask 1046534
  %v793 = vsel %vm792, %v474, %v791
  %vm794 = vcmask 1047559
  %v795 = vsel %vm794, %v476, %v793
  %v796 = vsel %vm782, %v465, %v463
  %v797 = vsel %vm784, %v467, %v796
  %v798 = vsel %vm786, %v469, %v797
  %v799 = vsel %vm788, %v471, %v798
  %v800 = vsel %vm790, %v473, %v799
  %v801 = vsel %vm792, %v475, %v800
  %v802 = vsel %vm794, %v477, %v801
  %v803 = vsel %vm782, %v480, %v478
  %v804 = vsel %vm784, %v482, %v803
  %v805 = vsel %vm786, %v484, %v804
  %v806 = vsel %vm788, %v486, %v805
  %v807 = vsel %vm790, %v488, %v806
  %v808 = vsel %vm792, %v490, %v807
  %v809 = vsel %vm794, %v492, %v808
  %v810 = vsel %vm782, %v481, %v479
  %v811 = vsel %vm784, %v483, %v810
  %v812 = vsel %vm786, %v485, %v811
  %v813 = vsel %vm788, %v487, %v812
  %v814 = vsel %vm790, %v489, %v813
  %v815 = vsel %vm792, %v491, %v814
  %v816 = vsel %vm794, %v493, %v815
  %v853 = vsel %vm782, %v720, %v718
  %v854 = vsel %vm784, %v722, %v853
  %v855 = vsel %vm786, %v724, %v854
  %v856 = vsel %vm788, %v726, %v855
  %v857 = vsel %vm790, %v728, %v856
  %v858 = vsel %vm792, %v730, %v857
  %v859 = vsel %vm794, %v732, %v858
  %v860 = vsel %vm782, %v721, %v719
  %v861 = vsel %vm784, %v723, %v860
  %v862 = vsel %vm786, %v725, %v861
  %v863 = vsel %vm788, %v727, %v862
  %v864 = vsel %vm790, %v729, %v863
  %v865 = vsel %vm792, %v731, %v864
  %v866 = vsel %vm794, %v733, %v865
  %v867 = vsel %vm782, %v736, %v734
  %v868 = vsel %vm784, %v738, %v867
  %v869 = vsel %vm786, %v740, %v868
  %v870 = vsel %vm788, %v742, %v869
  %v871 = vsel %vm790, %v744, %v870
  %v872 = vsel %vm792, %v746, %v871
  %v873 = vsel %vm794, %v748, %v872
  %v874 = vsel %vm782, %v737, %v735
  %v875 = vsel %vm784, %v739, %v874
  %v876 = vsel %vm786, %v741, %v875
  %v877 = vsel %vm788, %v743, %v876
  %v878 = vsel %vm790, %v745, %v877
  %v879 = vsel %vm792, %v747, %v878
  %v880 = vsel %vm794, %v749, %v879
  %v885 = vpack.c.bf16 %v809, %v795
  %v886 = vpack.c.bf16 %v816, %v802
  %v887 = vpack.c.bf16 %v873, %v859
  %v888 = vpack.c.bf16 %v880, %v866
  %v889 = vld [vmem:[%s2] sm:$0xff]
  %v890 = vld [vmem:[%s2 + $0x8] sm:$0xff]
  %v891 = vld [vmem:[%s2 + $0x10] sm:$0xff]
  %v892 = vld [vmem:[%s2 + $0x18] sm:$0xff]
  %v893 = vld [vmem:[%s2 + $0x20] sm:$0xff]
  %v894 = vld [vmem:[%s2 + $0x28] sm:$0xff]
  %v895 = vld [vmem:[%s2 + $0x30] sm:$0xff]
  %v896 = vld [vmem:[%s2 + $0x38] sm:$0xff]
  %v897 = vld [vmem:[%s2 + $0x40] sm:$0xff]
  %v898 = vld [vmem:[%s2 + $0x48] sm:$0xff]
  %v899 = vld [vmem:[%s2 + $0x50] sm:$0xff]
  %v900 = vld [vmem:[%s2 + $0x58] sm:$0xff]
  %v901 = vld [vmem:[%s2 + $0x60] sm:$0xff]
  %v902 = vld [vmem:[%s2 + $0x68] sm:$0xff]
  %v903 = vld [vmem:[%s2 + $0x70] sm:$0xff]
  %v904 = vld [vmem:[%s2 + $0x78] sm:$0xff]
  %v905 = vld [vmem:[%s2 + $0x80] sm:$0xff]
  %v906 = vld [vmem:[%s2 + $0x88] sm:$0xff]
  %v907 = vld [vmem:[%s2 + $0x90] sm:$0xff]
  %v908 = vld [vmem:[%s2 + $0x98] sm:$0xff]
  %v909 = vld [vmem:[%s2 + $0xa0] sm:$0xff]
  %v910 = vld [vmem:[%s2 + $0xa8] sm:$0xff]
  %v911 = vld [vmem:[%s2 + $0xb0] sm:$0xff]
  %v912 = vld [vmem:[%s2 + $0xb8] sm:$0xff]
  %v913 = vld [vmem:[%s2 + $0xc0] sm:$0xff]
  %v914 = vld [vmem:[%s2 + $0xc8] sm:$0xff]
  %v915 = vld [vmem:[%s2 + $0xd0] sm:$0xff]
  %v916 = vld [vmem:[%s2 + $0xd8] sm:$0xff]
  %v917 = vld [vmem:[%s2 + $0xe0] sm:$0xff]
  %v918 = vld [vmem:[%s2 + $0xe8] sm:$0xff]
  %v919 = vld [vmem:[%s2 + $0xf0] sm:$0xff]
  %v920 = vld [vmem:[%s2 + $0xf8] sm:$0xff]
  %v921 = vld [vmem:[%s2 + $0x100] sm:$0xff]
  %v922 = vld [vmem:[%s2 + $0x108] sm:$0xff]
  %v923 = vld [vmem:[%s2 + $0x110] sm:$0xff]
  %v924 = vld [vmem:[%s2 + $0x118] sm:$0xff]
  %v925 = vld [vmem:[%s2 + $0x120] sm:$0xff]
  %v926 = vld [vmem:[%s2 + $0x128] sm:$0xff]
  %v927 = vld [vmem:[%s2 + $0x130] sm:$0xff]
  %v928 = vld [vmem:[%s2 + $0x138] sm:$0xff]
  %v929 = vld [vmem:[%s2 + $0x140] sm:$0xff]
  %v930 = vld [vmem:[%s2 + $0x148] sm:$0xff]
  %v931 = vld [vmem:[%s2 + $0x150] sm:$0xff]
  %v932 = vld [vmem:[%s2 + $0x158] sm:$0xff]
  %v933 = vld [vmem:[%s2 + $0x160] sm:$0xff]
  %v934 = vld [vmem:[%s2 + $0x168] sm:$0xff]
  %v935 = vld [vmem:[%s2 + $0x170] sm:$0xff]
  %v936 = vld [vmem:[%s2 + $0x178] sm:$0xff]
  %v937 = vld [vmem:[%s2 + $0x180] sm:$0xff]
  %v938 = vld [vmem:[%s2 + $0x188] sm:$0xff]
  %v939 = vld [vmem:[%s2 + $0x190] sm:$0xff]
  %v940 = vld [vmem:[%s2 + $0x198] sm:$0xff]
  %v941 = vld [vmem:[%s2 + $0x1a0] sm:$0xff]
  %v942 = vld [vmem:[%s2 + $0x1a8] sm:$0xff]
  %v943 = vld [vmem:[%s2 + $0x1b0] sm:$0xff]
  %v944 = vld [vmem:[%s2 + $0x1b8] sm:$0xff]
  %v945 = vld [vmem:[%s2 + $0x1c0] sm:$0xff]
  %v946 = vld [vmem:[%s2 + $0x1c8] sm:$0xff]
  %v947 = vld [vmem:[%s2 + $0x1d0] sm:$0xff]
  %v948 = vld [vmem:[%s2 + $0x1d8] sm:$0xff]
  %v949 = vld [vmem:[%s2 + $0x1e0] sm:$0xff]
  %v950 = vld [vmem:[%s2 + $0x1e8] sm:$0xff]
  %v951 = vld [vmem:[%s2 + $0x1f0] sm:$0xff]
  %v952 = vld [vmem:[%s2 + $0x1f8] sm:$0xff]
  %v953 = vld [vmem:[%s2 + $0x200] sm:$0xff]
  %v954 = vld [vmem:[%s2 + $0x208] sm:$0xff]
  %v955 = vld [vmem:[%s2 + $0x210] sm:$0xff]
  %v956 = vld [vmem:[%s2 + $0x218] sm:$0xff]
  %v957 = vld [vmem:[%s2 + $0x220] sm:$0xff]
  %v958 = vld [vmem:[%s2 + $0x228] sm:$0xff]
  %v959 = vld [vmem:[%s2 + $0x230] sm:$0xff]
  %v960 = vld [vmem:[%s2 + $0x238] sm:$0xff]
  %v961 = vld [vmem:[%s2 + $0x240] sm:$0xff]
  %v962 = vld [vmem:[%s2 + $0x248] sm:$0xff]
  %v963 = vld [vmem:[%s2 + $0x250] sm:$0xff]
  %v964 = vld [vmem:[%s2 + $0x258] sm:$0xff]
  %v965 = vld [vmem:[%s2 + $0x260] sm:$0xff]
  %v966 = vld [vmem:[%s2 + $0x268] sm:$0xff]
  %v967 = vld [vmem:[%s2 + $0x270] sm:$0xff]
  %v968 = vld [vmem:[%s2 + $0x278] sm:$0xff]
  %v969 = vld [vmem:[%s2 + $0x280] sm:$0xff]
  %v970 = vld [vmem:[%s2 + $0x288] sm:$0xff]
  %v971 = vld [vmem:[%s2 + $0x290] sm:$0xff]
  %v972 = vld [vmem:[%s2 + $0x298] sm:$0xff]
  %v973 = vld [vmem:[%s2 + $0x2a0] sm:$0xff]
  %v974 = vld [vmem:[%s2 + $0x2a8] sm:$0xff]
  %v975 = vld [vmem:[%s2 + $0x2b0] sm:$0xff]
  %v976 = vld [vmem:[%s2 + $0x2b8] sm:$0xff]
  %v977 = vld [vmem:[%s2 + $0x2c0] sm:$0xff]
  %v978 = vld [vmem:[%s2 + $0x2c8] sm:$0xff]
  %v979 = vld [vmem:[%s2 + $0x2d0] sm:$0xff]
  %v980 = vld [vmem:[%s2 + $0x2d8] sm:$0xff]
  %v981 = vld [vmem:[%s2 + $0x2e0] sm:$0xff]
  %v982 = vld [vmem:[%s2 + $0x2e8] sm:$0xff]
  %v983 = vld [vmem:[%s2 + $0x2f0] sm:$0xff]
  %v984 = vld [vmem:[%s2 + $0x2f8] sm:$0xff]
  %v985 = vld [vmem:[%s2 + $0x300] sm:$0xff]
  %v986 = vld [vmem:[%s2 + $0x308] sm:$0xff]
  %v987 = vld [vmem:[%s2 + $0x310] sm:$0xff]
  %v988 = vld [vmem:[%s2 + $0x318] sm:$0xff]
  %v989 = vld [vmem:[%s2 + $0x320] sm:$0xff]
  %v990 = vld [vmem:[%s2 + $0x328] sm:$0xff]
  %v991 = vld [vmem:[%s2 + $0x330] sm:$0xff]
  %v992 = vld [vmem:[%s2 + $0x338] sm:$0xff]
  %v993 = vld [vmem:[%s2 + $0x340] sm:$0xff]
  %v994 = vld [vmem:[%s2 + $0x348] sm:$0xff]
  %v995 = vld [vmem:[%s2 + $0x350] sm:$0xff]
  %v996 = vld [vmem:[%s2 + $0x358] sm:$0xff]
  %v997 = vld [vmem:[%s2 + $0x360] sm:$0xff]
  %v998 = vld [vmem:[%s2 + $0x368] sm:$0xff]
  %v999 = vld [vmem:[%s2 + $0x370] sm:$0xff]
  %v1000 = vld [vmem:[%s2 + $0x378] sm:$0xff]
  %v1001 = vld [vmem:[%s2 + $0x380] sm:$0xff]
  %v1002 = vld [vmem:[%s2 + $0x388] sm:$0xff]
  %v1003 = vld [vmem:[%s2 + $0x390] sm:$0xff]
  %v1004 = vld [vmem:[%s2 + $0x398] sm:$0xff]
  %v1005 = vld [vmem:[%s2 + $0x3a0] sm:$0xff]
  %v1006 = vld [vmem:[%s2 + $0x3a8] sm:$0xff]
  %v1007 = vld [vmem:[%s2 + $0x3b0] sm:$0xff]
  %v1008 = vld [vmem:[%s2 + $0x3b8] sm:$0xff]
  %v1009 = vld [vmem:[%s2 + $0x3c0] sm:$0xff]
  %v1010 = vld [vmem:[%s2 + $0x3c8] sm:$0xff]
  %v1011 = vld [vmem:[%s2 + $0x3d0] sm:$0xff]
  %v1012 = vld [vmem:[%s2 + $0x3d8] sm:$0xff]
  %v1013 = vld [vmem:[%s2 + $0x3e0] sm:$0xff]
  %v1014 = vld [vmem:[%s2 + $0x3e8] sm:$0xff]
  %v1015 = vld [vmem:[%s2 + $0x3f0] sm:$0xff]
  %v1016 = vld [vmem:[%s2 + $0x3f8] sm:$0xff]
  %v1145 = vunpack.c.l.b16 %v889
  %v1146 = vunpack.c.h.b16 %v889
  %v1147 = vunpack.c.l.b16 %v890
  %v1148 = vunpack.c.h.b16 %v890
  %v1149 = vunpack.c.l.b16 %v891
  %v1150 = vunpack.c.h.b16 %v891
  %v1151 = vunpack.c.l.b16 %v892
  %v1152 = vunpack.c.h.b16 %v892
  %v1153 = vunpack.c.l.b16 %v893
  %v1154 = vunpack.c.h.b16 %v893
  %v1155 = vunpack.c.l.b16 %v894
  %v1156 = vunpack.c.h.b16 %v894
  %v1157 = vunpack.c.l.b16 %v895
  %v1158 = vunpack.c.h.b16 %v895
  %v1159 = vunpack.c.l.b16 %v896
  %v1160 = vunpack.c.h.b16 %v896
  %v1161 = vunpack.c.l.b16 %v897
  %v1162 = vunpack.c.h.b16 %v897
  %v1163 = vunpack.c.l.b16 %v898
  %v1164 = vunpack.c.h.b16 %v898
  %v1165 = vunpack.c.l.b16 %v899
  %v1166 = vunpack.c.h.b16 %v899
  %v1167 = vunpack.c.l.b16 %v900
  %v1168 = vunpack.c.h.b16 %v900
  %v1169 = vunpack.c.l.b16 %v901
  %v1170 = vunpack.c.h.b16 %v901
  %v1171 = vunpack.c.l.b16 %v902
  %v1172 = vunpack.c.h.b16 %v902
  %v1173 = vunpack.c.l.b16 %v903
  %v1174 = vunpack.c.h.b16 %v903
  %v1175 = vunpack.c.l.b16 %v904
  %v1176 = vunpack.c.h.b16 %v904
  %v1177 = vunpack.c.l.b16 %v905
  %v1178 = vunpack.c.h.b16 %v905
  %v1179 = vunpack.c.l.b16 %v906
  %v1180 = vunpack.c.h.b16 %v906
  %v1181 = vunpack.c.l.b16 %v907
  %v1182 = vunpack.c.h.b16 %v907
  %v1183 = vunpack.c.l.b16 %v908
  %v1184 = vunpack.c.h.b16 %v908
  %v1185 = vunpack.c.l.b16 %v909
  %v1186 = vunpack.c.h.b16 %v909
  %v1187 = vunpack.c.l.b16 %v910
  %v1188 = vunpack.c.h.b16 %v910
  %v1189 = vunpack.c.l.b16 %v911
  %v1190 = vunpack.c.h.b16 %v911
  %v1191 = vunpack.c.l.b16 %v912
  %v1192 = vunpack.c.h.b16 %v912
  %v1193 = vunpack.c.l.b16 %v913
  %v1194 = vunpack.c.h.b16 %v913
  %v1195 = vunpack.c.l.b16 %v914
  %v1196 = vunpack.c.h.b16 %v914
  %v1197 = vunpack.c.l.b16 %v915
  %v1198 = vunpack.c.h.b16 %v915
  %v1199 = vunpack.c.l.b16 %v916
  %v1200 = vunpack.c.h.b16 %v916
  %v1201 = vunpack.c.l.b16 %v917
  %v1202 = vunpack.c.h.b16 %v917
  %v1203 = vunpack.c.l.b16 %v918
  %v1204 = vunpack.c.h.b16 %v918
  %v1205 = vunpack.c.l.b16 %v919
  %v1206 = vunpack.c.h.b16 %v919
  %v1207 = vunpack.c.l.b16 %v920
  %v1208 = vunpack.c.h.b16 %v920
  %v1209 = vunpack.c.l.b16 %v921
  %v1210 = vunpack.c.h.b16 %v921
  %v1211 = vunpack.c.l.b16 %v922
  %v1212 = vunpack.c.h.b16 %v922
  %v1213 = vunpack.c.l.b16 %v923
  %v1214 = vunpack.c.h.b16 %v923
  %v1215 = vunpack.c.l.b16 %v924
  %v1216 = vunpack.c.h.b16 %v924
  %v1217 = vunpack.c.l.b16 %v925
  %v1218 = vunpack.c.h.b16 %v925
  %v1219 = vunpack.c.l.b16 %v926
  %v1220 = vunpack.c.h.b16 %v926
  %v1221 = vunpack.c.l.b16 %v927
  %v1222 = vunpack.c.h.b16 %v927
  %v1223 = vunpack.c.l.b16 %v928
  %v1224 = vunpack.c.h.b16 %v928
  %v1225 = vunpack.c.l.b16 %v929
  %v1226 = vunpack.c.h.b16 %v929
  %v1227 = vunpack.c.l.b16 %v930
  %v1228 = vunpack.c.h.b16 %v930
  %v1229 = vunpack.c.l.b16 %v931
  %v1230 = vunpack.c.h.b16 %v931
  %v1231 = vunpack.c.l.b16 %v932
  %v1232 = vunpack.c.h.b16 %v932
  %v1233 = vunpack.c.l.b16 %v933
  %v1234 = vunpack.c.h.b16 %v933
  %v1235 = vunpack.c.l.b16 %v934
  %v1236 = vunpack.c.h.b16 %v934
  %v1237 = vunpack.c.l.b16 %v935
  %v1238 = vunpack.c.h.b16 %v935
  %v1239 = vunpack.c.l.b16 %v936
  %v1240 = vunpack.c.h.b16 %v936
  %v1241 = vunpack.c.l.b16 %v937
  %v1242 = vunpack.c.h.b16 %v937
  %v1243 = vunpack.c.l.b16 %v938
  %v1244 = vunpack.c.h.b16 %v938
  %v1245 = vunpack.c.l.b16 %v939
  %v1246 = vunpack.c.h.b16 %v939
  %v1247 = vunpack.c.l.b16 %v940
  %v1248 = vunpack.c.h.b16 %v940
  %v1249 = vunpack.c.l.b16 %v941
  %v1250 = vunpack.c.h.b16 %v941
  %v1251 = vunpack.c.l.b16 %v942
  %v1252 = vunpack.c.h.b16 %v942
  %v1253 = vunpack.c.l.b16 %v943
  %v1254 = vunpack.c.h.b16 %v943
  %v1255 = vunpack.c.l.b16 %v944
  %v1256 = vunpack.c.h.b16 %v944
  %v1257 = vunpack.c.l.b16 %v945
  %v1258 = vunpack.c.h.b16 %v945
  %v1259 = vunpack.c.l.b16 %v946
  %v1260 = vunpack.c.h.b16 %v946
  %v1261 = vunpack.c.l.b16 %v947
  %v1262 = vunpack.c.h.b16 %v947
  %v1263 = vunpack.c.l.b16 %v948
  %v1264 = vunpack.c.h.b16 %v948
  %v1265 = vunpack.c.l.b16 %v949
  %v1266 = vunpack.c.h.b16 %v949
  %v1267 = vunpack.c.l.b16 %v950
  %v1268 = vunpack.c.h.b16 %v950
  %v1269 = vunpack.c.l.b16 %v951
  %v1270 = vunpack.c.h.b16 %v951
  %v1271 = vunpack.c.l.b16 %v952
  %v1272 = vunpack.c.h.b16 %v952
  %v1273 = vunpack.c.l.b16 %v953
  %v1274 = vunpack.c.h.b16 %v953
  %v1275 = vunpack.c.l.b16 %v954
  %v1276 = vunpack.c.h.b16 %v954
  %v1277 = vunpack.c.l.b16 %v955
  %v1278 = vunpack.c.h.b16 %v955
  %v1279 = vunpack.c.l.b16 %v956
  %v1280 = vunpack.c.h.b16 %v956
  %v1281 = vunpack.c.l.b16 %v957
  %v1282 = vunpack.c.h.b16 %v957
  %v1283 = vunpack.c.l.b16 %v958
  %v1284 = vunpack.c.h.b16 %v958
  %v1285 = vunpack.c.l.b16 %v959
  %v1286 = vunpack.c.h.b16 %v959
  %v1287 = vunpack.c.l.b16 %v960
  %v1288 = vunpack.c.h.b16 %v960
  %v1289 = vunpack.c.l.b16 %v961
  %v1290 = vunpack.c.h.b16 %v961
  %v1291 = vunpack.c.l.b16 %v962
  %v1292 = vunpack.c.h.b16 %v962
  %v1293 = vunpack.c.l.b16 %v963
  %v1294 = vunpack.c.h.b16 %v963
  %v1295 = vunpack.c.l.b16 %v964
  %v1296 = vunpack.c.h.b16 %v964
  %v1297 = vunpack.c.l.b16 %v965
  %v1298 = vunpack.c.h.b16 %v965
  %v1299 = vunpack.c.l.b16 %v966
  %v1300 = vunpack.c.h.b16 %v966
  %v1301 = vunpack.c.l.b16 %v967
  %v1302 = vunpack.c.h.b16 %v967
  %v1303 = vunpack.c.l.b16 %v968
  %v1304 = vunpack.c.h.b16 %v968
  %v1305 = vunpack.c.l.b16 %v969
  %v1306 = vunpack.c.h.b16 %v969
  %v1307 = vunpack.c.l.b16 %v970
  %v1308 = vunpack.c.h.b16 %v970
  %v1309 = vunpack.c.l.b16 %v971
  %v1310 = vunpack.c.h.b16 %v971
  %v1311 = vunpack.c.l.b16 %v972
  %v1312 = vunpack.c.h.b16 %v972
  %v1313 = vunpack.c.l.b16 %v973
  %v1314 = vunpack.c.h.b16 %v973
  %v1315 = vunpack.c.l.b16 %v974
  %v1316 = vunpack.c.h.b16 %v974
  %v1317 = vunpack.c.l.b16 %v975
  %v1318 = vunpack.c.h.b16 %v975
  %v1319 = vunpack.c.l.b16 %v976
  %v1320 = vunpack.c.h.b16 %v976
  %v1321 = vunpack.c.l.b16 %v977
  %v1322 = vunpack.c.h.b16 %v977
  %v1323 = vunpack.c.l.b16 %v978
  %v1324 = vunpack.c.h.b16 %v978
  %v1325 = vunpack.c.l.b16 %v979
  %v1326 = vunpack.c.h.b16 %v979
  %v1327 = vunpack.c.l.b16 %v980
  %v1328 = vunpack.c.h.b16 %v980
  %v1329 = vunpack.c.l.b16 %v981
  %v1330 = vunpack.c.h.b16 %v981
  %v1331 = vunpack.c.l.b16 %v982
  %v1332 = vunpack.c.h.b16 %v982
  %v1333 = vunpack.c.l.b16 %v983
  %v1334 = vunpack.c.h.b16 %v983
  %v1335 = vunpack.c.l.b16 %v984
  %v1336 = vunpack.c.h.b16 %v984
  %v1337 = vunpack.c.l.b16 %v985
  %v1338 = vunpack.c.h.b16 %v985
  %v1339 = vunpack.c.l.b16 %v986
  %v1340 = vunpack.c.h.b16 %v986
  %v1341 = vunpack.c.l.b16 %v987
  %v1342 = vunpack.c.h.b16 %v987
  %v1343 = vunpack.c.l.b16 %v988
  %v1344 = vunpack.c.h.b16 %v988
  %v1345 = vunpack.c.l.b16 %v989
  %v1346 = vunpack.c.h.b16 %v989
  %v1347 = vunpack.c.l.b16 %v990
  %v1348 = vunpack.c.h.b16 %v990
  %v1349 = vunpack.c.l.b16 %v991
  %v1350 = vunpack.c.h.b16 %v991
  %v1351 = vunpack.c.l.b16 %v992
  %v1352 = vunpack.c.h.b16 %v992
  %v1353 = vunpack.c.l.b16 %v993
  %v1354 = vunpack.c.h.b16 %v993
  %v1355 = vunpack.c.l.b16 %v994
  %v1356 = vunpack.c.h.b16 %v994
  %v1357 = vunpack.c.l.b16 %v995
  %v1358 = vunpack.c.h.b16 %v995
  %v1359 = vunpack.c.l.b16 %v996
  %v1360 = vunpack.c.h.b16 %v996
  %v1361 = vunpack.c.l.b16 %v997
  %v1362 = vunpack.c.h.b16 %v997
  %v1363 = vunpack.c.l.b16 %v998
  %v1364 = vunpack.c.h.b16 %v998
  %v1365 = vunpack.c.l.b16 %v999
  %v1366 = vunpack.c.h.b16 %v999
  %v1367 = vunpack.c.l.b16 %v1000
  %v1368 = vunpack.c.h.b16 %v1000
  %v1369 = vunpack.c.l.b16 %v1001
  %v1370 = vunpack.c.h.b16 %v1001
  %v1371 = vunpack.c.l.b16 %v1002
  %v1372 = vunpack.c.h.b16 %v1002
  %v1373 = vunpack.c.l.b16 %v1003
  %v1374 = vunpack.c.h.b16 %v1003
  %v1375 = vunpack.c.l.b16 %v1004
  %v1376 = vunpack.c.h.b16 %v1004
  %v1377 = vunpack.c.l.b16 %v1005
  %v1378 = vunpack.c.h.b16 %v1005
  %v1379 = vunpack.c.l.b16 %v1006
  %v1380 = vunpack.c.h.b16 %v1006
  %v1381 = vunpack.c.l.b16 %v1007
  %v1382 = vunpack.c.h.b16 %v1007
  %v1383 = vunpack.c.l.b16 %v1008
  %v1384 = vunpack.c.h.b16 %v1008
  %v1385 = vunpack.c.l.b16 %v1009
  %v1386 = vunpack.c.h.b16 %v1009
  %v1387 = vunpack.c.l.b16 %v1010
  %v1388 = vunpack.c.h.b16 %v1010
  %v1389 = vunpack.c.l.b16 %v1011
  %v1390 = vunpack.c.h.b16 %v1011
  %v1391 = vunpack.c.l.b16 %v1012
  %v1392 = vunpack.c.h.b16 %v1012
  %v1393 = vunpack.c.l.b16 %v1013
  %v1394 = vunpack.c.h.b16 %v1013
  %v1395 = vunpack.c.l.b16 %v1014
  %v1396 = vunpack.c.h.b16 %v1014
  %v1397 = vunpack.c.l.b16 %v1015
  %v1398 = vunpack.c.h.b16 %v1015
  %v1399 = vunpack.c.l.b16 %v1016
  %v1400 = vunpack.c.h.b16 %v1016
  %v1401 = vpack.c.b16 %v1149, %v1145
  %v1402 = vpack.c.b16 %v1150, %v1146
  %v1403 = vpack.c.b16 %v1151, %v1147
  %v1404 = vpack.c.b16 %v1152, %v1148
  %v1405 = vpack.c.b16 %v1157, %v1153
  %v1406 = vpack.c.b16 %v1158, %v1154
  %v1407 = vpack.c.b16 %v1159, %v1155
  %v1408 = vpack.c.b16 %v1160, %v1156
  %v1409 = vpack.c.b16 %v1165, %v1161
  %v1410 = vpack.c.b16 %v1166, %v1162
  %v1411 = vpack.c.b16 %v1167, %v1163
  %v1412 = vpack.c.b16 %v1168, %v1164
  %v1413 = vpack.c.b16 %v1173, %v1169
  %v1414 = vpack.c.b16 %v1174, %v1170
  %v1415 = vpack.c.b16 %v1175, %v1171
  %v1416 = vpack.c.b16 %v1176, %v1172
  %v1417 = vpack.c.b16 %v1181, %v1177
  %v1418 = vpack.c.b16 %v1182, %v1178
  %v1419 = vpack.c.b16 %v1183, %v1179
  %v1420 = vpack.c.b16 %v1184, %v1180
  %v1421 = vpack.c.b16 %v1189, %v1185
  %v1422 = vpack.c.b16 %v1190, %v1186
  %v1423 = vpack.c.b16 %v1191, %v1187
  %v1424 = vpack.c.b16 %v1192, %v1188
  %v1425 = vpack.c.b16 %v1197, %v1193
  %v1426 = vpack.c.b16 %v1198, %v1194
  %v1427 = vpack.c.b16 %v1199, %v1195
  %v1428 = vpack.c.b16 %v1200, %v1196
  %v1429 = vpack.c.b16 %v1205, %v1201
  %v1430 = vpack.c.b16 %v1206, %v1202
  %v1431 = vpack.c.b16 %v1207, %v1203
  %v1432 = vpack.c.b16 %v1208, %v1204
  %v1433 = vpack.c.b16 %v1213, %v1209
  %v1434 = vpack.c.b16 %v1214, %v1210
  %v1435 = vpack.c.b16 %v1215, %v1211
  %v1436 = vpack.c.b16 %v1216, %v1212
  %v1437 = vpack.c.b16 %v1221, %v1217
  %v1438 = vpack.c.b16 %v1222, %v1218
  %v1439 = vpack.c.b16 %v1223, %v1219
  %v1440 = vpack.c.b16 %v1224, %v1220
  %v1441 = vpack.c.b16 %v1229, %v1225
  %v1442 = vpack.c.b16 %v1230, %v1226
  %v1443 = vpack.c.b16 %v1231, %v1227
  %v1444 = vpack.c.b16 %v1232, %v1228
  %v1445 = vpack.c.b16 %v1237, %v1233
  %v1446 = vpack.c.b16 %v1238, %v1234
  %v1447 = vpack.c.b16 %v1239, %v1235
  %v1448 = vpack.c.b16 %v1240, %v1236
  %v1449 = vpack.c.b16 %v1245, %v1241
  %v1450 = vpack.c.b16 %v1246, %v1242
  %v1451 = vpack.c.b16 %v1247, %v1243
  %v1452 = vpack.c.b16 %v1248, %v1244
  %v1453 = vpack.c.b16 %v1253, %v1249
  %v1454 = vpack.c.b16 %v1254, %v1250
  %v1455 = vpack.c.b16 %v1255, %v1251
  %v1456 = vpack.c.b16 %v1256, %v1252
  %v1457 = vpack.c.b16 %v1261, %v1257
  %v1458 = vpack.c.b16 %v1262, %v1258
  %v1459 = vpack.c.b16 %v1263, %v1259
  %v1460 = vpack.c.b16 %v1264, %v1260
  %v1461 = vpack.c.b16 %v1269, %v1265
  %v1462 = vpack.c.b16 %v1270, %v1266
  %v1463 = vpack.c.b16 %v1271, %v1267
  %v1464 = vpack.c.b16 %v1272, %v1268
  %v1465 = vpack.c.b16 %v1277, %v1273
  %v1466 = vpack.c.b16 %v1278, %v1274
  %v1467 = vpack.c.b16 %v1279, %v1275
  %v1468 = vpack.c.b16 %v1280, %v1276
  %v1469 = vpack.c.b16 %v1285, %v1281
  %v1470 = vpack.c.b16 %v1286, %v1282
  %v1471 = vpack.c.b16 %v1287, %v1283
  %v1472 = vpack.c.b16 %v1288, %v1284
  %v1473 = vpack.c.b16 %v1293, %v1289
  %v1474 = vpack.c.b16 %v1294, %v1290
  %v1475 = vpack.c.b16 %v1295, %v1291
  %v1476 = vpack.c.b16 %v1296, %v1292
  %v1477 = vpack.c.b16 %v1301, %v1297
  %v1478 = vpack.c.b16 %v1302, %v1298
  %v1479 = vpack.c.b16 %v1303, %v1299
  %v1480 = vpack.c.b16 %v1304, %v1300
  %v1481 = vpack.c.b16 %v1309, %v1305
  %v1482 = vpack.c.b16 %v1310, %v1306
  %v1483 = vpack.c.b16 %v1311, %v1307
  %v1484 = vpack.c.b16 %v1312, %v1308
  %v1485 = vpack.c.b16 %v1317, %v1313
  %v1486 = vpack.c.b16 %v1318, %v1314
  %v1487 = vpack.c.b16 %v1319, %v1315
  %v1488 = vpack.c.b16 %v1320, %v1316
  %v1489 = vpack.c.b16 %v1325, %v1321
  %v1490 = vpack.c.b16 %v1326, %v1322
  %v1491 = vpack.c.b16 %v1327, %v1323
  %v1492 = vpack.c.b16 %v1328, %v1324
  %v1493 = vpack.c.b16 %v1333, %v1329
  %v1494 = vpack.c.b16 %v1334, %v1330
  %v1495 = vpack.c.b16 %v1335, %v1331
  %v1496 = vpack.c.b16 %v1336, %v1332
  %v1497 = vpack.c.b16 %v1341, %v1337
  %v1498 = vpack.c.b16 %v1342, %v1338
  %v1499 = vpack.c.b16 %v1343, %v1339
  %v1500 = vpack.c.b16 %v1344, %v1340
  %v1501 = vpack.c.b16 %v1349, %v1345
  %v1502 = vpack.c.b16 %v1350, %v1346
  %v1503 = vpack.c.b16 %v1351, %v1347
  %v1504 = vpack.c.b16 %v1352, %v1348
  %v1505 = vpack.c.b16 %v1357, %v1353
  %v1506 = vpack.c.b16 %v1358, %v1354
  %v1507 = vpack.c.b16 %v1359, %v1355
  %v1508 = vpack.c.b16 %v1360, %v1356
  %v1509 = vpack.c.b16 %v1365, %v1361
  %v1510 = vpack.c.b16 %v1366, %v1362
  %v1511 = vpack.c.b16 %v1367, %v1363
  %v1512 = vpack.c.b16 %v1368, %v1364
  %v1513 = vpack.c.b16 %v1373, %v1369
  %v1514 = vpack.c.b16 %v1374, %v1370
  %v1515 = vpack.c.b16 %v1375, %v1371
  %v1516 = vpack.c.b16 %v1376, %v1372
  %v1517 = vpack.c.b16 %v1381, %v1377
  %v1518 = vpack.c.b16 %v1382, %v1378
  %v1519 = vpack.c.b16 %v1383, %v1379
  %v1520 = vpack.c.b16 %v1384, %v1380
  %v1521 = vpack.c.b16 %v1389, %v1385
  %v1522 = vpack.c.b16 %v1390, %v1386
  %v1523 = vpack.c.b16 %v1391, %v1387
  %v1524 = vpack.c.b16 %v1392, %v1388
  %v1525 = vpack.c.b16 %v1397, %v1393
  %v1526 = vpack.c.b16 %v1398, %v1394
  %v1527 = vpack.c.b16 %v1399, %v1395
  %v1528 = vpack.c.b16 %v1400, %v1396
  %1657 = vmatprep.subr.bf16.mxu0 %v1402
  %1658 = vmatpush1.bf16.msra.mxu0 %v1401
  %1659 = vmatprep.subr.bf16.mxu0 %v1406
  %1660 = vmatpush1.bf16.msra.mxu0 %v1405
  %1661 = vmatprep.subr.bf16.mxu0 %v1410
  %1662 = vmatpush1.bf16.msra.mxu0 %v1409
  %1663 = vmatprep.subr.bf16.mxu0 %v1414
  %1664 = vmatpush1.bf16.msra.mxu0 %v1413
  %1665 = vmatprep.subr.bf16.mxu0 %v1418
  %1666 = vmatpush1.bf16.msra.mxu0 %v1417
  %1667 = vmatprep.subr.bf16.mxu0 %v1422
  %1668 = vmatpush1.bf16.msra.mxu0 %v1421
  %1669 = vmatprep.subr.bf16.mxu0 %v1426
  %1670 = vmatpush1.bf16.msra.mxu0 %v1425
  %1671 = vmatprep.subr.bf16.mxu0 %v1430
  %1672 = vmatpush1.bf16.msra.mxu0 %v1429
  %1673 = vmatprep.subr.bf16.mxu0 %v1434
  %1674 = vmatpush1.bf16.msra.mxu0 %v1433
  %1675 = vmatprep.subr.bf16.mxu0 %v1438
  %1676 = vmatpush1.bf16.msra.mxu0 %v1437
  %1677 = vmatprep.subr.bf16.mxu0 %v1442
  %1678 = vmatpush1.bf16.msra.mxu0 %v1441
  %1679 = vmatprep.subr.bf16.mxu0 %v1446
  %1680 = vmatpush1.bf16.msra.mxu0 %v1445
  %1681 = vmatprep.subr.bf16.mxu0 %v1450
  %1682 = vmatpush1.bf16.msra.mxu0 %v1449
  %1683 = vmatprep.subr.bf16.mxu0 %v1454
  %1684 = vmatpush1.bf16.msra.mxu0 %v1453
  %1685 = vmatprep.subr.bf16.mxu0 %v1458
  %1686 = vmatpush1.bf16.msra.mxu0 %v1457
  %1687 = vmatprep.subr.bf16.mxu0 %v1462
  %1688 = vmatpush1.bf16.msra.mxu0 %v1461
  %1689 = vmatprep.mubr.bf16.mxu0 %v886
  %1690 = vmatmul.mubr.bf16.gmra.mrb[0].mxu0 %v885
  %v1691 = vpop.f32.mrb[0].mxu0
  %v1692 = vadd.f32 0.0, %v1691
  %v1693 = vpop.f32.mrb[0].mxu0
  %v1694 = vadd.f32 0.0, %v1693
  %v1695 = vpop.f32.mrb[0].mxu0
  %v1696 = vadd.f32 0.0, %v1695
  %v1697 = vpop.f32.mrb[0].mxu0
  %v1698 = vadd.f32 0.0, %v1697
  %1699 = vdwg.mxu0
  %1700 = vmatprep.subr.bf16.mxu0 %v1466
  %1701 = vmatpush1.bf16.msra.mxu0 %v1465
  %1702 = vmatprep.subr.bf16.mxu0 %v1470
  %1703 = vmatpush1.bf16.msra.mxu0 %v1469
  %1704 = vmatprep.subr.bf16.mxu0 %v1474
  %1705 = vmatpush1.bf16.msra.mxu0 %v1473
  %1706 = vmatprep.subr.bf16.mxu0 %v1478
  %1707 = vmatpush1.bf16.msra.mxu0 %v1477
  %1708 = vmatprep.subr.bf16.mxu0 %v1482
  %1709 = vmatpush1.bf16.msra.mxu0 %v1481
  %1710 = vmatprep.subr.bf16.mxu0 %v1486
  %1711 = vmatpush1.bf16.msra.mxu0 %v1485
  %1712 = vmatprep.subr.bf16.mxu0 %v1490
  %1713 = vmatpush1.bf16.msra.mxu0 %v1489
  %1714 = vmatprep.subr.bf16.mxu0 %v1494
  %1715 = vmatpush1.bf16.msra.mxu0 %v1493
  %1716 = vmatprep.subr.bf16.mxu0 %v1498
  %1717 = vmatpush1.bf16.msra.mxu0 %v1497
  %1718 = vmatprep.subr.bf16.mxu0 %v1502
  %1719 = vmatpush1.bf16.msra.mxu0 %v1501
  %1720 = vmatprep.subr.bf16.mxu0 %v1506
  %1721 = vmatpush1.bf16.msra.mxu0 %v1505
  %1722 = vmatprep.subr.bf16.mxu0 %v1510
  %1723 = vmatpush1.bf16.msra.mxu0 %v1509
  %1724 = vmatprep.subr.bf16.mxu0 %v1514
  %1725 = vmatpush1.bf16.msra.mxu0 %v1513
  %1726 = vmatprep.subr.bf16.mxu0 %v1518
  %1727 = vmatpush1.bf16.msra.mxu0 %v1517
  %1728 = vmatprep.subr.bf16.mxu0 %v1522
  %1729 = vmatpush1.bf16.msra.mxu0 %v1521
  %1730 = vmatprep.subr.bf16.mxu0 %v1526
  %1731 = vmatpush1.bf16.msra.mxu0 %v1525
  %1732 = vmatprep.mubr.bf16.mxu0 %v888
  %1733 = vmatmul.mubr.bf16.gmra.mrb[0].mxu0 %v887
  %v1734 = vpop.f32.mrb[0].mxu0
  %v1735 = vadd.f32 %v1692, %v1734
  %v1736 = vpop.f32.mrb[0].mxu0
  %v1737 = vadd.f32 %v1694, %v1736
  %v1738 = vpop.f32.mrb[0].mxu0
  %v1739 = vadd.f32 %v1696, %v1738
  %v1740 = vpop.f32.mrb[0].mxu0
  %v1741 = vadd.f32 %v1698, %v1740
  %1742 = vdwg.mxu0
  %1743 = vmatprep.subr.bf16.mxu0 %v1404
  %1744 = vmatpush1.bf16.msra.mxu0 %v1403
  %1745 = vmatprep.subr.bf16.mxu0 %v1408
  %1746 = vmatpush1.bf16.msra.mxu0 %v1407
  %1747 = vmatprep.subr.bf16.mxu0 %v1412
  %1748 = vmatpush1.bf16.msra.mxu0 %v1411
  %1749 = vmatprep.subr.bf16.mxu0 %v1416
  %1750 = vmatpush1.bf16.msra.mxu0 %v1415
  %1751 = vmatprep.subr.bf16.mxu0 %v1420
  %1752 = vmatpush1.bf16.msra.mxu0 %v1419
  %1753 = vmatprep.subr.bf16.mxu0 %v1424
  %1754 = vmatpush1.bf16.msra.mxu0 %v1423
  %1755 = vmatprep.subr.bf16.mxu0 %v1428
  %1756 = vmatpush1.bf16.msra.mxu0 %v1427
  %1757 = vmatprep.subr.bf16.mxu0 %v1432
  %1758 = vmatpush1.bf16.msra.mxu0 %v1431
  %1759 = vmatprep.subr.bf16.mxu0 %v1436
  %1760 = vmatpush1.bf16.msra.mxu0 %v1435
  %1761 = vmatprep.subr.bf16.mxu0 %v1440
  %1762 = vmatpush1.bf16.msra.mxu0 %v1439
  %1763 = vmatprep.subr.bf16.mxu0 %v1444
  %1764 = vmatpush1.bf16.msra.mxu0 %v1443
  %1765 = vmatprep.subr.bf16.mxu0 %v1448
  %1766 = vmatpush1.bf16.msra.mxu0 %v1447
  %1767 = vmatprep.subr.bf16.mxu0 %v1452
  %1768 = vmatpush1.bf16.msra.mxu0 %v1451
  %1769 = vmatprep.subr.bf16.mxu0 %v1456
  %1770 = vmatpush1.bf16.msra.mxu0 %v1455
  %1771 = vmatprep.subr.bf16.mxu0 %v1460
  %1772 = vmatpush1.bf16.msra.mxu0 %v1459
  %1773 = vmatprep.subr.bf16.mxu0 %v1464
  %1774 = vmatpush1.bf16.msra.mxu0 %v1463
  %1775 = vmatprep.mubr.bf16.mxu0 %v886
  %1776 = vmatmul.mubr.bf16.gmra.mrb[0].mxu0 %v885
  %v1777 = vpop.f32.mrb[0].mxu0
  %v1778 = vadd.f32 0.0, %v1777
  %v1779 = vpop.f32.mrb[0].mxu0
  %v1780 = vadd.f32 0.0, %v1779
  %v1781 = vpop.f32.mrb[0].mxu0
  %v1782 = vadd.f32 0.0, %v1781
  %v1783 = vpop.f32.mrb[0].mxu0
  %v1784 = vadd.f32 0.0, %v1783
  %1785 = vdwg.mxu0
  %1786 = vmatprep.subr.bf16.mxu0 %v1468
  %1787 = vmatpush1.bf16.msra.mxu0 %v1467
  %1788 = vmatprep.subr.bf16.mxu0 %v1472
  %1789 = vmatpush1.bf16.msra.mxu0 %v1471
  %1790 = vmatprep.subr.bf16.mxu0 %v1476
  %1791 = vmatpush1.bf16.msra.mxu0 %v1475
  %1792 = vmatprep.subr.bf16.mxu0 %v1480
  %1793 = vmatpush1.bf16.msra.mxu0 %v1479
  %1794 = vmatprep.subr.bf16.mxu0 %v1484
  %1795 = vmatpush1.bf16.msra.mxu0 %v1483
  %1796 = vmatprep.subr.bf16.mxu0 %v1488
  %1797 = vmatpush1.bf16.msra.mxu0 %v1487
  %1798 = vmatprep.subr.bf16.mxu0 %v1492
  %1799 = vmatpush1.bf16.msra.mxu0 %v1491
  %1800 = vmatprep.subr.bf16.mxu0 %v1496
  %1801 = vmatpush1.bf16.msra.mxu0 %v1495
  %1802 = vmatprep.subr.bf16.mxu0 %v1500
  %1803 = vmatpush1.bf16.msra.mxu0 %v1499
  %1804 = vmatprep.subr.bf16.mxu0 %v1504
  %1805 = vmatpush1.bf16.msra.mxu0 %v1503
  %1806 = vmatprep.subr.bf16.mxu0 %v1508
  %1807 = vmatpush1.bf16.msra.mxu0 %v1507
  %1808 = vmatprep.subr.bf16.mxu0 %v1512
  %1809 = vmatpush1.bf16.msra.mxu0 %v1511
  %1810 = vmatprep.subr.bf16.mxu0 %v1516
  %1811 = vmatpush1.bf16.msra.mxu0 %v1515
  %1812 = vmatprep.subr.bf16.mxu0 %v1520
  %1813 = vmatpush1.bf16.msra.mxu0 %v1519
  %1814 = vmatprep.subr.bf16.mxu0 %v1524
  %1815 = vmatpush1.bf16.msra.mxu0 %v1523
  %1816 = vmatprep.subr.bf16.mxu0 %v1528
  %1817 = vmatpush1.bf16.msra.mxu0 %v1527
  %1818 = vmatprep.mubr.bf16.mxu0 %v888
  %1819 = vmatmul.mubr.bf16.gmra.mrb[0].mxu0 %v887
  %v1820 = vpop.f32.mrb[0].mxu0
  %v1821 = vadd.f32 %v1778, %v1820
  %v1822 = vpop.f32.mrb[0].mxu0
  %v1823 = vadd.f32 %v1780, %v1822
  %v1824 = vpop.f32.mrb[0].mxu0
  %v1825 = vadd.f32 %v1782, %v1824
  %v1826 = vpop.f32.mrb[0].mxu0
  %v1827 = vadd.f32 %v1784, %v1826
  %1828 = vdwg.mxu0
  %v1829 = vlaneseq
  %v1830 = vand.u32 %v1829, 127
  %v1831 = vadd.s32 %v1830, 128
  %v1832 = vadd.s32 %v1830, 256
  %v1833 = vadd.s32 %v1830, 384
  %v1834 = vmax.f32 %v1735, %v1821
  %v1835 = vmax.f32 %v1737, %v1823
  %v1836 = vmax.f32 %v1834, %v1835
  %1837 = vmax.xlane.f32.xlu0 %v1836
  %v1838 = vpop.xlane.xlu0 %1837
  %v1839 = vmax.f32 %v1739, %v1825
  %v1840 = vmax.f32 %v1741, %v1827
  %v1841 = vmax.f32 %v1839, %v1840
  %1842 = vmax.xlane.f32.xlu0 %v1841
  %v1843 = vpop.xlane.xlu0 %1842
  %vm1844 = vcmp.eq.f32.partialorder %v1735, %v1838
  %vm1845 = vcmp.eq.f32.partialorder %v1737, %v1838
  %vm1846 = vcmp.eq.f32.partialorder %v1821, %v1838
  %vm1847 = vcmp.eq.f32.partialorder %v1823, %v1838
  %vm1848 = vcmp.eq.f32.partialorder %v1739, %v1843
  %vm1849 = vcmp.eq.f32.partialorder %v1741, %v1843
  %vm1850 = vcmp.eq.f32.partialorder %v1825, %v1843
  %vm1851 = vcmp.eq.f32.partialorder %v1827, %v1843
  %v1852 = vsel %vm1844, %v1830, 512
  %v1853 = vsel %vm1845, %v1831, 512
  %v1854 = vsel %vm1846, %v1832, 512
  %v1855 = vsel %vm1847, %v1833, 512
  %v1856 = vsel %vm1848, %v1830, 512
  %v1857 = vsel %vm1849, %v1831, 512
  %v1858 = vsel %vm1850, %v1832, 512
  %v1859 = vsel %vm1851, %v1833, 512
  %vm1860 = vcmp.lt.s32.totalorder %v1852, %v1854
  %v1861 = vsel %vm1860, %v1852, %v1854
  %vm1862 = vcmp.lt.s32.totalorder %v1853, %v1855
  %v1863 = vsel %vm1862, %v1853, %v1855
  %vm1864 = vcmp.lt.s32.totalorder %v1861, %v1863
  %v1865 = vsel %vm1864, %v1861, %v1863
  %v1866 = vand.u32 %v1865, 65535
  %v1867 = vshra.s32 %v1865, 16
  %v1868 = vcvt.s32.f32 %v1866
  %v1869 = vcvt.s32.f32 %v1867
  %1870 = vmin.xlane.f32.xlu0 %v1869
  %v1871 = vpop.xlane.xlu0 %1870
  %vm1872 = vcmp.eq.f32.partialorder %v1869, %v1871
  %v1873 = vsel %vm1872, %v1868, inf
  %1874 = vmin.xlane.f32.xlu0 %v1873
  %v1875 = vpop.xlane.xlu0 %1874
  %v1876 = vcvt.f32.s32 %v1875
  %v1877 = vcvt.f32.s32 %v1871
  %v1878 = vshll.u32 %v1877, 16
  %v1879 = vadd.s32 %v1878, %v1876
  %vm1880 = vcmp.lt.s32.totalorder %v1856, %v1858
  %v1881 = vsel %vm1880, %v1856, %v1858
  %vm1882 = vcmp.lt.s32.totalorder %v1857, %v1859
  %v1883 = vsel %vm1882, %v1857, %v1859
  %vm1884 = vcmp.lt.s32.totalorder %v1881, %v1883
  %v1885 = vsel %vm1884, %v1881, %v1883
  %v1886 = vand.u32 %v1885, 65535
  %v1887 = vshra.s32 %v1885, 16
  %v1888 = vcvt.s32.f32 %v1886
  %v1889 = vcvt.s32.f32 %v1887
  %1890 = vmin.xlane.f32.xlu0 %v1889
  %v1891 = vpop.xlane.xlu0 %1890
  %vm1892 = vcmp.eq.f32.partialorder %v1889, %v1891
  %v1893 = vsel %vm1892, %v1888, inf
  %1894 = vmin.xlane.f32.xlu0 %v1893
  %v1895 = vpop.xlane.xlu0 %1894
  %v1896 = vcvt.f32.s32 %v1895
  %v1897 = vcvt.f32.s32 %v1891
  %v1898 = vshll.u32 %v1897, 16
  %v1899 = vadd.s32 %v1898, %v1896
  %v1900 = vshra.s32 %v1879, 6
  %v1901 = vshra.s32 %v1899, 6
  %v1902 = vand.u32 %v1879, 63
  %v1903 = vand.u32 %v1899, 63
  %v1904 = vcvt.s32.f32 %v1900
  %v1905 = vcvt.s32.f32 %v1901
  %v1906 = vmul.f32 %v1904, 0.125
  %v1907 = vmul.f32 %v1905, 0.125
  %v1908 = vcvt.s32.f32 %v1902
  %v1909 = vcvt.s32.f32 %v1903
  %v1910 = vmul.f32 %v1908, 0.015625
  %v1911 = vmul.f32 %v1909, 0.015625
  %1912 = vst [vmem:[%s3] sm:$0xff] %v1735
  %1913 = vst [vmem:[%s3 + $0x8] sm:$0xff] %v1737
  %1914 = vst [vmem:[%s3 + $0x10] sm:$0xff] %v1821
  %1915 = vst [vmem:[%s3 + $0x18] sm:$0xff] %v1823
  %1916 = vst [vmem:[%s3 + $0x60] sm:$0xff] %v1739
  %1917 = vst [vmem:[%s3 + $0x68] sm:$0xff] %v1741
  %1918 = vst [vmem:[%s3 + $0x70] sm:$0xff] %v1825
  %1919 = vst [vmem:[%s3 + $0x78] sm:$0xff] %v1827
  %1920 = vst [vmem:[%s3 + $0x20] sm:$0xff] %v1906
  %1921 = vst [vmem:[%s3 + $0x28] sm:$0xff] %v1906
  %1922 = vst [vmem:[%s3 + $0x30] sm:$0xff] %v1906
  %1923 = vst [vmem:[%s3 + $0x38] sm:$0xff] %v1906
  %1924 = vst [vmem:[%s3 + $0x80] sm:$0xff] %v1907
  %1925 = vst [vmem:[%s3 + $0x88] sm:$0xff] %v1907
  %1926 = vst [vmem:[%s3 + $0x90] sm:$0xff] %v1907
  %1927 = vst [vmem:[%s3 + $0x98] sm:$0xff] %v1907
  %1928 = vst [vmem:[%s3 + $0x40] sm:$0xff] %v1910
  %1929 = vst [vmem:[%s3 + $0x48] sm:$0xff] %v1910
  %1930 = vst [vmem:[%s3 + $0x50] sm:$0xff] %v1910
  %1931 = vst [vmem:[%s3 + $0x58] sm:$0xff] %v1910
  %1932 = vst [vmem:[%s3 + $0xa0] sm:$0xff] %v1911
  %1933 = vst [vmem:[%s3 + $0xa8] sm:$0xff] %v1911
  %1934 = vst [vmem:[%s3 + $0xb0] sm:$0xff] %v1911
  %1935 = vst [vmem:[%s3 + $0xb8] sm:$0xff] %v1911
  // Predicated region
  $region14: #{locformer_feature_extractor.1} parent=0 // pred_check
    _
  $region15: #{locformer_feature_extractor.1} parent=0 // pred_check_branch
    %1937 = sbr.rel (0) target = $region17
  $region16: #{locformer_feature_extractor.1} parent=0 // pred_region
    _
  $region17: #{locformer_feature_extractor.1} parent=0 // pred_fallthru
    _
  // Predicated region
  $region18: #{locformer_feature_extractor.1} parent=0 // pred_check
    _
  $region19: #{locformer_feature_extractor.1} parent=0 // pred_check_branch
    %1939 = sbr.rel (0) target = $region21
  $region20: #{locformer_feature_extractor.1} parent=0 // pred_region
    _
  $region21: #{locformer_feature_extractor.1} parent=0 // pred_fallthru
    _

</llo_original>
